<compile_context>
chip_gen: v6e
topology: v6e:2x2x1
jax: 0.10.0
libtpu: 0.0.40
codegen_flags: <defaults>
</compile_context>

<pallas_src>
import jax
import jax.numpy as jnp
from jax.experimental import pallas as pl
from jax.experimental.pallas import tpu as pltpu

F_NUM = 11
G_NUM = 60
INPUT_SIZE = G_NUM * F_NUM            # 660
L_NODE = INPUT_SIZE // 2              # 330
L_NODE_2 = L_NODE // 2                # 165
OUTPUT_SIZE = 10

# Lane-aligned (multiple-of-128) padded feature dims. All pads are zeros, so the
# result is bit-identical to the unpadded computation (tanh(0)=0 feeds zero rows).
IN_PAD = 768     # 660 -> 768
H1_PAD = 384     # 330 -> 384
H2_PAD = 256     # 165 -> 256

DEFAULT_TILE_B = 256                  # ~0.4 MB bf16 x-tile, double-buffered; weights ~0.8 MB


def _round_up(n, m):
    return (n + m - 1) // m * m


def _mlp_kernel(x_ref, w1_ref, b1_ref, w2_ref, b2_ref, w3_ref, b3_ref, o_ref):
    # Read biases once (hoisted; no per-iteration re-broadcast if a loop is added later).
    b1 = b1_ref[...]
    b2 = b2_ref[...]
    b3 = b3_ref[...]

    # Layer 1: tanh(x @ W1 + b1). bf16 operands, f32 accumulation on the MXU,
    # tanh in f32 (mandatory on v5e: no bf16 VPU/EUP).
    h1 = jnp.tanh(
        jnp.dot(x_ref[...], w1_ref[...], preferred_element_type=jnp.float32) + b1
    ).astype(jnp.bfloat16)

    # Layer 2: tanh(h1 @ W2 + b2)
    h2 = jnp.tanh(
        jnp.dot(h1, w2_ref[...], preferred_element_type=jnp.float32) + b2
    ).astype(jnp.bfloat16)

    # Output layer (no activation), f32 output.
    o_ref[...] = (
        jnp.dot(h2, w3_ref[...], preferred_element_type=jnp.float32) + b3
    )


def init_params(key):
    """Match nn.Linear default init; weights stored as (in, out) so y = x @ W + b."""
    k1, k2, k3, k4, k5, k6 = jax.random.split(key, 6)

    def linear_init(kw, kb, fan_in, fan_out):
        bound = 1.0 / jnp.sqrt(jnp.float32(fan_in))
        w = jax.random.uniform(kw, (fan_in, fan_out), jnp.float32, -bound, bound)
        b = jax.random.uniform(kb, (1, fan_out), jnp.float32, -bound, bound)
        return w, b

    w1, b1 = linear_init(k1, k2, INPUT_SIZE, L_NODE)
    w2, b2 = linear_init(k3, k4, L_NODE, L_NODE_2)
    w3, b3 = linear_init(k5, k6, L_NODE_2, OUTPUT_SIZE)
    return w1, b1, w2, b2, w3, b3


def pad_and_cast_params(params):
    """One-time host-side layout prep: zero-pad feature dims to 128 multiples,
    weights -> bf16, biases stay f32 (zero-padded)."""
    w1, b1, w2, b2, w3, b3 = params

    def pad_w(w, rows, cols):
        w = jnp.asarray(w, jnp.float32)
        return jnp.pad(w, ((0, rows - w.shape[0]), (0, cols - w.shape[1]))).astype(
            jnp.bfloat16
        )

    def pad_b(b, cols):
        b = jnp.asarray(b, jnp.float32)
        return jnp.pad(b, ((0, 0), (0, cols - b.shape[1])))

    return (
        pad_w(w1, IN_PAD, H1_PAD), pad_b(b1, H1_PAD),
        pad_w(w2, H1_PAD, H2_PAD), pad_b(b2, H2_PAD),
        pad_w(w3, H2_PAD, OUTPUT_SIZE), jnp.asarray(b3, jnp.float32),
    )


def learning_group_forward(x, padded_params, *, tile_b=DEFAULT_TILE_B):
    """Batch-tiled 3-layer MLP in a single pallas_call."""
    w1p, b1p, w2p, b2p, w3p, b3p = padded_params

    x = x.astype(jnp.float32)              # mirrors `x = x.float()` in the torch module
    B = x.shape[0]

    # Zero-pad feature dim 660 -> 768 and quantize activations to bf16.
    x_p = jnp.pad(x, ((0, 0), (0, IN_PAD - x.shape[1]))).astype(jnp.bfloat16)

    # Shrink the tile for small batches (keep sublane-aligned).
    tile_b = min(tile_b, _round_up(B, 8))
    grid = (pl.cdiv(B, tile_b),)

    def resident(shape):
        # Whole-array block, constant index -> stays VMEM-resident across batch tiles.
        return pl.BlockSpec(shape, lambda i: (0, 0))

    cost = pl.CostEstimate(
        flops=2 * B * (INPUT_SIZE * L_NODE + L_NODE * L_NODE_2 + L_NODE_2 * OUTPUT_SIZE),
        transcendentals=B * (L_NODE + L_NODE_2),
        bytes_accessed=(
            (w1p.size + w2p.size + w3p.size) * 2
            + (b1p.size + b2p.size + b3p.size) * 4
            + B * IN_PAD * 2
            + B * OUTPUT_SIZE * 4
        ),
    )

    return pl.pallas_call(
        _mlp_kernel,
        out_shape=jax.ShapeDtypeStruct((B, OUTPUT_SIZE), jnp.float32),
        grid=grid,
        in_specs=[
            pl.BlockSpec((tile_b, IN_PAD), lambda i: (i, 0)),   # batch-tiled input
            resident(w1p.shape), resident(b1p.shape),
            resident(w2p.shape), resident(b2p.shape),
            resident(w3p.shape), resident(b3p.shape),
        ],
        out_specs=pl.BlockSpec((tile_b, OUTPUT_SIZE), lambda i: (i, 0)),
        compiler_params=pltpu.CompilerParams(
            dimension_semantics=("parallel",),   # v7x: split batch tiles across 2 TCs
        ),
        cost_estimate=cost,
    )(x_p, w1p, b1p, w2p, b2p, w3p, b3p)


# ----------------------------- references -----------------------------------

def reference_forward_f32(x, params):
    """Pure f32 reference (the original module's math)."""
    w1, b1, w2, b2, w3, b3 = params
    x = x.astype(jnp.float32)
    h1 = jnp.tanh(x @ w1 + b1)
    h2 = jnp.tanh(h1 @ w2 + b2)
    return h2 @ w3 + b3


def reference_forward_bf16(x, padded_params):
    """Reference that mirrors the kernel's bf16/f32 mixed precision exactly."""
    w1p, b1p, w2p, b2p, w3p, b3p = padded_params
    x = x.astype(jnp.float32)
    x_p = jnp.pad(x, ((0, 0), (0, IN_PAD - x.shape[1]))).astype(jnp.bfloat16)
    h1 = jnp.tanh(
        jnp.dot(x_p, w1p, preferred_element_type=jnp.float32) + b1p
    ).astype(jnp.bfloat16)
    h2 = jnp.tanh(
        jnp.dot(h1, w2p, preferred_element_type=jnp.float32) + b2p
    ).astype(jnp.bfloat16)
    return jnp.dot(h2, w3p, preferred_element_type=jnp.float32) + b3p


if __name__ == "__main__":
    key = jax.random.PRNGKey(0)
    kx1, kx2, kp = jax.random.split(key, 3)

    params = init_params(kp)
    padded_params = pad_and_cast_params(params)

    # Case 1: small batch (single partial tile).
    b1_sz = 8
    x1 = jax.random.normal(kx1, (b1_sz, INPUT_SIZE), dtype=jnp.float32)
    out1 = jax.block_until_ready(learning_group_forward(x1, padded_params))
    assert out1.shape == (b1_sz, OUTPUT_SIZE)
    ref1_bf16 = reference_forward_bf16(x1, padded_params)
    ref1_f32 = reference_forward_f32(x1, params)
    assert jnp.allclose(out1, ref1_bf16, atol=2e-3, rtol=2e-3), "mismatch vs bf16 reference (B=8)"
    assert jnp.allclose(out1, ref1_f32, atol=5e-2, rtol=0), "mismatch vs f32 reference (B=8)"

    # Case 2: multi-tile grid with a ragged final tile (exercises the pipeline path).
    b2_sz = 300
    x2 = jax.random.normal(kx2, (b2_sz, INPUT_SIZE), dtype=jnp.float32)
    out2 = jax.block_until_ready(learning_group_forward(x2, padded_params))
    assert out2.shape == (b2_sz, OUTPUT_SIZE)
    ref2_bf16 = reference_forward_bf16(x2, padded_params)
    ref2_f32 = reference_forward_f32(x2, params)
    assert jnp.allclose(out2, ref2_bf16, atol=2e-3, rtol=2e-3), "mismatch vs bf16 reference (B=300)"
    assert jnp.allclose(out2, ref2_f32, atol=5e-2, rtol=0), "mismatch vs f32 reference (B=300)"

    print("KERNEL_OK")
</pallas_src>

<mosaic_0001>
module attributes {stable_mosaic.version = 11 : i64} {
  func.func @_mlp_kernel(%arg0: i32, %arg1: memref<8x768xbf16, #tpu.memory_space<vmem>>, %arg2: memref<768x384xbf16, #tpu.memory_space<vmem>>, %arg3: memref<1x384xf32, #tpu.memory_space<vmem>>, %arg4: memref<384x256xbf16, #tpu.memory_space<vmem>>, %arg5: memref<1x256xf32, #tpu.memory_space<vmem>>, %arg6: memref<256x10xbf16, #tpu.memory_space<vmem>>, %arg7: memref<1x10xf32, #tpu.memory_space<vmem>>, %arg8: memref<8x10xf32, #tpu.memory_space<vmem>>) attributes {dimension_semantics = [#tpu.dimension_semantics<parallel>], iteration_bounds = array<i64: 1>, scalar_prefetch = 0 : i64, scratch_operands = 0 : i64, tpu.core_type = #tpu.core_type<tc>, window_params = [{transform_indices = @transform_0, window_bounds = array<i64: 8, 768>}, {pipeline_mode = #tpu.pipeline_mode<synchronous>, transform_indices = @transform_1, window_bounds = array<i64: 768, 384>}, {pipeline_mode = #tpu.pipeline_mode<synchronous>, transform_indices = @transform_2, window_bounds = array<i64: 1, 384>}, {pipeline_mode = #tpu.pipeline_mode<synchronous>, transform_indices = @transform_3, window_bounds = array<i64: 384, 256>}, {pipeline_mode = #tpu.pipeline_mode<synchronous>, transform_indices = @transform_4, window_bounds = array<i64: 1, 256>}, {pipeline_mode = #tpu.pipeline_mode<synchronous>, transform_indices = @transform_5, window_bounds = array<i64: 256, 10>}, {pipeline_mode = #tpu.pipeline_mode<synchronous>, transform_indices = @transform_6, window_bounds = array<i64: 1, 10>}, {transform_indices = @transform_7, window_bounds = array<i64: 8, 10>}]} {
    %c0 = arith.constant 0 : index
    %c0_0 = arith.constant 0 : index
    %0 = vector.load %arg3[%c0, %c0_0] : memref<1x384xf32, #tpu.memory_space<vmem>>, vector<1x384xf32>
    %c0_1 = arith.constant 0 : index
    %c0_2 = arith.constant 0 : index
    %1 = vector.load %arg5[%c0_1, %c0_2] : memref<1x256xf32, #tpu.memory_space<vmem>>, vector<1x256xf32>
    %c0_3 = arith.constant 0 : index
    %c0_4 = arith.constant 0 : index
    %2 = vector.load %arg7[%c0_3, %c0_4] : memref<1x10xf32, #tpu.memory_space<vmem>>, vector<1x10xf32>
    %c0_5 = arith.constant 0 : index
    %c0_6 = arith.constant 0 : index
    %3 = vector.load %arg1[%c0_5, %c0_6] : memref<8x768xbf16, #tpu.memory_space<vmem>>, vector<8x768xbf16>
    %c0_7 = arith.constant 0 : index
    %c0_8 = arith.constant 0 : index
    %4 = vector.load %arg2[%c0_7, %c0_8] : memref<768x384xbf16, #tpu.memory_space<vmem>>, vector<768x384xbf16>
    %cst = arith.constant dense<0.000000e+00> : vector<8x384xf32>
    %5 = tpu.matmul %3, %4, %cst {dimension_numbers = #tpu.dot_dimension_numbers<[1], [0], [0], [1], [0, 0, 1, 1], [], []>} : vector<8x768xbf16>, vector<768x384xbf16>, vector<8x384xf32> -> vector<8x384xf32>
    %6 = vector.broadcast %0 : vector<1x384xf32> to vector<8x384xf32>
    %7 = arith.addf %5, %6 : vector<8x384xf32>
    %8 = math.tanh %7 : vector<8x384xf32>
    %9 = arith.truncf %8 : vector<8x384xf32> to vector<8x384xbf16>
    %c0_9 = arith.constant 0 : index
    %c0_10 = arith.constant 0 : index
    %10 = vector.load %arg4[%c0_9, %c0_10] : memref<384x256xbf16, #tpu.memory_space<vmem>>, vector<384x256xbf16>
    %cst_11 = arith.constant dense<0.000000e+00> : vector<8x256xf32>
    %11 = tpu.matmul %9, %10, %cst_11 {dimension_numbers = #tpu.dot_dimension_numbers<[1], [0], [0], [1], [0, 0, 1, 1], [], []>} : vector<8x384xbf16>, vector<384x256xbf16>, vector<8x256xf32> -> vector<8x256xf32>
    %12 = vector.broadcast %1 : vector<1x256xf32> to vector<8x256xf32>
    %13 = arith.addf %11, %12 : vector<8x256xf32>
    %14 = math.tanh %13 : vector<8x256xf32>
    %15 = arith.truncf %14 : vector<8x256xf32> to vector<8x256xbf16>
    %c0_12 = arith.constant 0 : index
    %c0_13 = arith.constant 0 : index
    %16 = vector.load %arg6[%c0_12, %c0_13] : memref<256x10xbf16, #tpu.memory_space<vmem>>, vector<256x10xbf16>
    %cst_14 = arith.constant dense<0.000000e+00> : vector<8x10xf32>
    %17 = tpu.matmul %15, %16, %cst_14 {dimension_numbers = #tpu.dot_dimension_numbers<[1], [0], [0], [1], [0, 0, 1, 1], [], []>} : vector<8x256xbf16>, vector<256x10xbf16>, vector<8x10xf32> -> vector<8x10xf32>
    %18 = vector.broadcast %2 : vector<1x10xf32> to vector<8x10xf32>
    %19 = arith.addf %17, %18 : vector<8x10xf32>
    %c0_15 = arith.constant 0 : index
    %c0_16 = arith.constant 0 : index
    %20 = vector.load %arg8[%c0_15, %c0_16] : memref<8x10xf32, #tpu.memory_space<vmem>>, vector<8x10xf32>
    tpu.vector_store %arg8[%c0_15, %c0_16], %19 {strides = array<i32>} : memref<8x10xf32, #tpu.memory_space<vmem>>, vector<8x10xf32>,
    return
  }
  func.func @transform_0(%arg0: i32) -> (i32, i32) {
    %c0_i32 = arith.constant 0 : i32
    %c0_i32_0 = arith.constant 0 : i32
    return %arg0, %c0_i32 : i32, i32
  }
  func.func @transform_1(%arg0: i32) -> (i32, i32) {
    %c0_i32 = arith.constant 0 : i32
    %c0_i32_0 = arith.constant 0 : i32
    %c0_i32_1 = arith.constant 0 : i32
    return %c0_i32, %c0_i32_0 : i32, i32
  }
  func.func @transform_2(%arg0: i32) -> (i32, i32) {
    %c0_i32 = arith.constant 0 : i32
    %c0_i32_0 = arith.constant 0 : i32
    %c0_i32_1 = arith.constant 0 : i32
    return %c0_i32, %c0_i32_0 : i32, i32
  }
  func.func @transform_3(%arg0: i32) -> (i32, i32) {
    %c0_i32 = arith.constant 0 : i32
    %c0_i32_0 = arith.constant 0 : i32
    %c0_i32_1 = arith.constant 0 : i32
    return %c0_i32, %c0_i32_0 : i32, i32
  }
  func.func @transform_4(%arg0: i32) -> (i32, i32) {
    %c0_i32 = arith.constant 0 : i32
    %c0_i32_0 = arith.constant 0 : i32
    %c0_i32_1 = arith.constant 0 : i32
    return %c0_i32, %c0_i32_0 : i32, i32
  }
  func.func @transform_5(%arg0: i32) -> (i32, i32) {
    %c0_i32 = arith.constant 0 : i32
    %c0_i32_0 = arith.constant 0 : i32
    %c0_i32_1 = arith.constant 0 : i32
    return %c0_i32, %c0_i32_0 : i32, i32
  }
  func.func @transform_6(%arg0: i32) -> (i32, i32) {
    %c0_i32 = arith.constant 0 : i32
    %c0_i32_0 = arith.constant 0 : i32
    %c0_i32_1 = arith.constant 0 : i32
    return %c0_i32, %c0_i32_0 : i32, i32
  }
  func.func @transform_7(%arg0: i32) -> (i32, i32) {
    %c0_i32 = arith.constant 0 : i32
    %c0_i32_0 = arith.constant 0 : i32
    return %arg0, %c0_i32 : i32, i32
  }
}

</mosaic_0001>

<llo_original>
// kernel: tpu_custom_call.1
$region0: #{tpu_custom_call.1}
  #allocation0 [shape = 'u32[]', space=smem, size = 0x4, offset = 0x4, fixed_abs, tag = 'smem constant byte address 0x4 - core index']
  #allocation1 [shape = 'u32[144,128]{1,0:T(1,128)}', space=vmem, size = 0x12000, scoped, tag = 'internal scratch']
  %s0 = inlined_call_operand.vmem [shape: bf16[8,768], index: 0, kind: input, shape index: {}]
  %s1 = inlined_call_operand.hbm [shape: bf16[768,384], index: 1, kind: input, shape index: {}]
  %s2 = inlined_call_operand.vmem [shape: f32[1,384], index: 2, kind: input, shape index: {}]
  %s3 = inlined_call_operand.hbm [shape: bf16[384,256], index: 3, kind: input, shape index: {}]
  %s4 = inlined_call_operand.vmem [shape: f32[1,256], index: 4, kind: input, shape index: {}]
  %s5 = inlined_call_operand.vmem [shape: bf16[256,10], index: 5, kind: input, shape index: {}]
  %s6 = inlined_call_operand.vmem [shape: f32[1,10], index: 6, kind: input, shape index: {}]
  %s7 = inlined_call_operand.hbm [shape: f32[8,10], index: 7, kind: output, shape index: {}]
  %s8 = sld [smem:[#allocation0]]
  $region46: #{tpu_custom_call.1} parent=0
    _
  %s10 = ssub.s32 1, %s8
  %s11 = scalar_select 0, %s10, %s8
  $region1: #{tpu_custom_call.1} parent=0
    #allocation2 [shape = 'u8[589824]{0}', space=vmem, size = 0x90000, scoped, tag = 'input window, operand 1, single buffered']
    #allocation3 [shape = 's32[1]{0}', space=sflag, size = 0x4, scoped, tag = 'scoped memory for tpu_custom_call.1']
    #allocation4 [shape = 's32[1]{0}', space=sflag, size = 0x4, scoped, tag = 'scoped memory for tpu_custom_call.1']
    #allocation5 [shape = 'u8[196608]{0}', space=vmem, size = 0x30000, scoped, tag = 'input window, operand 3, single buffered']
    #allocation6 [shape = 's32[1]{0}', space=sflag, size = 0x4, scoped, tag = 'scoped memory for tpu_custom_call.1']
    #allocation7 [shape = 'u8[4096]{0}', space=vmem, size = 0x1000, scoped, tag = 'output window, operand 0, single buffered']
    %12 = vsyncpa [#allocation3], 0
    %13 = vsyncpa [#allocation6], 0
    %14 = vsyncpa [#allocation4], 0
    // Predicated region
    $region2: #{tpu_custom_call.1} parent=1 // pred_check
      _
    $region3: #{tpu_custom_call.1} parent=1 // pred_check_branch
      %16 = sbr.rel (0) target = $region5
    $region4: #{tpu_custom_call.1} parent=1 // pred_region
      _
    $region5: #{tpu_custom_call.1} parent=1 // pred_fallthru
      _
    // Predicated region
    $region6: #{tpu_custom_call.1} parent=1 // pred_check
      _
    $region7: #{tpu_custom_call.1} parent=1 // pred_check_branch
      %18 = sbr.rel (0) target = $region9
    $region8: #{tpu_custom_call.1} parent=1 // pred_region
      %s20 = ssub.s32 18432, 18432
      %21 = vsyncadd [#allocation3], %s20
      %s22 = sshll.u32 [#allocation2], 4
      %s23 = int_to_ptr.vmem [resolvable:$true] %s22
      %28 = dma.hbm_to_vmem [thread:$0]  %s1, 18432, %s23, [#allocation3], 192, 192, 12
    $region9: #{tpu_custom_call.1} parent=1 // pred_fallthru
      _
    // Predicated region
    $region10: #{tpu_custom_call.1} parent=1 // pred_check
      _
    $region11: #{tpu_custom_call.1} parent=1 // pred_check_branch
      %30 = sbr.rel (0) target = $region13
    $region12: #{tpu_custom_call.1} parent=1 // pred_region
      _
    $region13: #{tpu_custom_call.1} parent=1 // pred_fallthru
      _
    // Predicated region
    $region14: #{tpu_custom_call.1} parent=1 // pred_check
      _
    $region15: #{tpu_custom_call.1} parent=1 // pred_check_branch
      %32 = sbr.rel (0) target = $region17
    $region16: #{tpu_custom_call.1} parent=1 // pred_region
      %s34 = ssub.s32 6144, 6144
      %35 = vsyncadd [#allocation6], %s34
      %s36 = sshll.u32 [#allocation5], 4
      %s37 = int_to_ptr.vmem [resolvable:$true] %s36
      %42 = dma.hbm_to_vmem [thread:$0]  %s3, 6144, %s37, [#allocation6], 128, 128, 8
    $region17: #{tpu_custom_call.1} parent=1 // pred_fallthru
      _
    // Predicated region
    $region18: #{tpu_custom_call.1} parent=1 // pred_check
      _
    $region19: #{tpu_custom_call.1} parent=1 // pred_check_branch
      %44 = sbr.rel (0) target = $region21
    $region20: #{tpu_custom_call.1} parent=1 // pred_region
      _
    $region21: #{tpu_custom_call.1} parent=1 // pred_fallthru
      _
    // Predicated region
    $region22: #{tpu_custom_call.1} parent=1 // pred_check
      _
    $region23: #{tpu_custom_call.1} parent=1 // pred_check_branch
      %46 = sbr.rel (0) target = $region25
    $region24: #{tpu_custom_call.1} parent=1 // pred_region
      _
    $region25: #{tpu_custom_call.1} parent=1 // pred_fallthru
      _
    // Predicated region
    $region26: #{tpu_custom_call.1} parent=1 // pred_check
      _
    $region27: #{tpu_custom_call.1} parent=1 // pred_check_branch
      %48 = sbr.rel (0) target = $region29
    $region28: #{tpu_custom_call.1} parent=1 // pred_region
      _
    $region29: #{tpu_custom_call.1} parent=1 // pred_fallthru
      _
    // Predicated region
    $region30: #{tpu_custom_call.1} parent=1 // pred_check
      _
    $region31: #{tpu_custom_call.1} parent=1 // pred_check_branch
      %50 = sbr.rel (0) target = $region33
    $region32: #{tpu_custom_call.1} parent=1 // pred_region
      %51 = dma.done [#allocation3], 18432
    $region33: #{tpu_custom_call.1} parent=1 // pred_fallthru
      _
    // Predicated region
    $region34: #{tpu_custom_call.1} parent=1 // pred_check
      _
    $region35: #{tpu_custom_call.1} parent=1 // pred_check_branch
      %53 = sbr.rel (0) target = $region37
    $region36: #{tpu_custom_call.1} parent=1 // pred_region
      %54 = dma.done [#allocation6], 6144
    $region37: #{tpu_custom_call.1} parent=1 // pred_fallthru
      _
    %v56 = vld [vmem:[%s2] sm:$0x7]
    %v57 = vld [vmem:[%s4] sm:$0x3]
    %v58 = vld [vmem:[%s6] sm:$0x1]
    %v59 = vld [vmem:[%s0] sm:$0xff]
    %v60 = vld [vmem:[%s0 + $0x8] sm:$0xff]
    %v61 = vld [vmem:[%s0 + $0x10] sm:$0xff]
    %v62 = vld [vmem:[#allocation2] sm:$0xff]
    %v63 = vld [vmem:[#allocation2 + $0x8] sm:$0xf]
    %v64 = vld [vmem:[#allocation2 + $0xc] sm:$0xff]
    %v65 = vld [vmem:[#allocation2 + $0x14] sm:$0xf]
    %v66 = vld [vmem:[#allocation2 + $0x18] sm:$0xff]
    %v67 = vld [vmem:[#allocation2 + $0x20] sm:$0xf]
    %v68 = vld [vmem:[#allocation2 + $0x24] sm:$0xff]
    %v69 = vld [vmem:[#allocation2 + $0x2c] sm:$0xf]
    %v70 = vld [vmem:[#allocation2 + $0x30] sm:$0xff]
    %v71 = vld [vmem:[#allocation2 + $0x38] sm:$0xf]
    %v72 = vld [vmem:[#allocation2 + $0x3c] sm:$0xff]
    %v73 = vld [vmem:[#allocation2 + $0x44] sm:$0xf]
    %v74 = vld [vmem:[#allocation2 + $0x48] sm:$0xff]
    %v75 = vld [vmem:[#allocation2 + $0x50] sm:$0xf]
    %v76 = vld [vmem:[#allocation2 + $0x54] sm:$0xff]
    %v77 = vld [vmem:[#allocation2 + $0x5c] sm:$0xf]
    %v78 = vld [vmem:[#allocation2 + $0x60] sm:$0xff]
    %v79 = vld [vmem:[#allocation2 + $0x68] sm:$0xf]
    %v80 = vld [vmem:[#allocation2 + $0x6c] sm:$0xff]
    %v81 = vld [vmem:[#allocation2 + $0x74] sm:$0xf]
    %v82 = vld [vmem:[#allocation2 + $0x78] sm:$0xff]
    %v83 = vld [vmem:[#allocation2 + $0x80] sm:$0xf]
    %v84 = vld [vmem:[#allocation2 + $0x84] sm:$0xff]
    %v85 = vld [vmem:[#allocation2 + $0x8c] sm:$0xf]
    %v86 = vld [vmem:[#allocation2 + $0x90] sm:$0xff]
    %v87 = vld [vmem:[#allocation2 + $0x98] sm:$0xf]
    %v88 = vld [vmem:[#allocation2 + $0x9c] sm:$0xff]
    %v89 = vld [vmem:[#allocation2 + $0xa4] sm:$0xf]
    %v90 = vld [vmem:[#allocation2 + $0xa8] sm:$0xff]
    %v91 = vld [vmem:[#allocation2 + $0xb0] sm:$0xf]
    %v92 = vld [vmem:[#allocation2 + $0xb4] sm:$0xff]
    %v93 = vld [vmem:[#allocation2 + $0xbc] sm:$0xf]
    %v94 = vld [vmem:[#allocation2 + $0xc0] sm:$0xff]
    %v95 = vld [vmem:[#allocation2 + $0xc8] sm:$0xf]
    %v96 = vld [vmem:[#allocation2 + $0xcc] sm:$0xff]
    %v97 = vld [vmem:[#allocation2 + $0xd4] sm:$0xf]
    %v98 = vld [vmem:[#allocation2 + $0xd8] sm:$0xff]
    %v99 = vld [vmem:[#allocation2 + $0xe0] sm:$0xf]
    %v100 = vld [vmem:[#allocation2 + $0xe4] sm:$0xff]
    %v101 = vld [vmem:[#allocation2 + $0xec] sm:$0xf]
    %v102 = vld [vmem:[#allocation2 + $0xf0] sm:$0xff]
    %v103 = vld [vmem:[#allocation2 + $0xf8] sm:$0xf]
    %v104 = vld [vmem:[#allocation2 + $0xfc] sm:$0xff]
    %v105 = vld [vmem:[#allocation2 + $0x104] sm:$0xf]
    %v106 = vld [vmem:[#allocation2 + $0x108] sm:$0xff]
    %v107 = vld [vmem:[#allocation2 + $0x110] sm:$0xf]
    %v108 = vld [vmem:[#allocation2 + $0x114] sm:$0xff]
    %v109 = vld [vmem:[#allocation2 + $0x11c] sm:$0xf]
    %v110 = vld [vmem:[#allocation2 + $0x120] sm:$0xff]
    %v111 = vld [vmem:[#allocation2 + $0x128] sm:$0xf]
    %v112 = vld [vmem:[#allocation2 + $0x12c] sm:$0xff]
    %v113 = vld [vmem:[#allocation2 + $0x134] sm:$0xf]
    %v114 = vld [vmem:[#allocation2 + $0x138] sm:$0xff]
    %v115 = vld [vmem:[#allocation2 + $0x140] sm:$0xf]
    %v116 = vld [vmem:[#allocation2 + $0x144] sm:$0xff]
    %v117 = vld [vmem:[#allocation2 + $0x14c] sm:$0xf]
    %v118 = vld [vmem:[#allocation2 + $0x150] sm:$0xff]
    %v119 = vld [vmem:[#allocation2 + $0x158] sm:$0xf]
    %v120 = vld [vmem:[#allocation2 + $0x15c] sm:$0xff]
    %v121 = vld [vmem:[#allocation2 + $0x164] sm:$0xf]
    %v122 = vld [vmem:[#allocation2 + $0x168] sm:$0xff]
    %v123 = vld [vmem:[#allocation2 + $0x170] sm:$0xf]
    %v124 = vld [vmem:[#allocation2 + $0x174] sm:$0xff]
    %v125 = vld [vmem:[#allocation2 + $0x17c] sm:$0xf]
    %v126 = vld [vmem:[#allocation2 + $0x180] sm:$0xff]
    %v127 = vld [vmem:[#allocation2 + $0x188] sm:$0xf]
    %v128 = vld [vmem:[#allocation2 + $0x18c] sm:$0xff]
    %v129 = vld [vmem:[#allocation2 + $0x194] sm:$0xf]
    %v130 = vld [vmem:[#allocation2 + $0x198] sm:$0xff]
    %v131 = vld [vmem:[#allocation2 + $0x1a0] sm:$0xf]
    %v132 = vld [vmem:[#allocation2 + $0x1a4] sm:$0xff]
    %v133 = vld [vmem:[#allocation2 + $0x1ac] sm:$0xf]
    %v134 = vld [vmem:[#allocation2 + $0x1b0] sm:$0xff]
    %v135 = vld [vmem:[#allocation2 + $0x1b8] sm:$0xf]
    %v136 = vld [vmem:[#allocation2 + $0x1bc] sm:$0xff]
    %v137 = vld [vmem:[#allocation2 + $0x1c4] sm:$0xf]
    %v138 = vld [vmem:[#allocation2 + $0x1c8] sm:$0xff]
    %v139 = vld [vmem:[#allocation2 + $0x1d0] sm:$0xf]
    %v140 = vld [vmem:[#allocation2 + $0x1d4] sm:$0xff]
    %v141 = vld [vmem:[#allocation2 + $0x1dc] sm:$0xf]
    %v142 = vld [vmem:[#allocation2 + $0x1e0] sm:$0xff]
    %v143 = vld [vmem:[#allocation2 + $0x1e8] sm:$0xf]
    %v144 = vld [vmem:[#allocation2 + $0x1ec] sm:$0xff]
    %v145 = vld [vmem:[#allocation2 + $0x1f4] sm:$0xf]
    %v146 = vld [vmem:[#allocation2 + $0x1f8] sm:$0xff]
    %v147 = vld [vmem:[#allocation2 + $0x200] sm:$0xf]
    %v148 = vld [vmem:[#allocation2 + $0x204] sm:$0xff]
    %v149 = vld [vmem:[#allocation2 + $0x20c] sm:$0xf]
    %v150 = vld [vmem:[#allocation2 + $0x210] sm:$0xff]
    %v151 = vld [vmem:[#allocation2 + $0x218] sm:$0xf]
    %v152 = vld [vmem:[#allocation2 + $0x21c] sm:$0xff]
    %v153 = vld [vmem:[#allocation2 + $0x224] sm:$0xf]
    %v154 = vld [vmem:[#allocation2 + $0x228] sm:$0xff]
    %v155 = vld [vmem:[#allocation2 + $0x230] sm:$0xf]
    %v156 = vld [vmem:[#allocation2 + $0x234] sm:$0xff]
    %v157 = vld [vmem:[#allocation2 + $0x23c] sm:$0xf]
    %v158 = vld [vmem:[#allocation2 + $0x240] sm:$0xff]
    %v159 = vld [vmem:[#allocation2 + $0x248] sm:$0xf]
    %v160 = vld [vmem:[#allocation2 + $0x24c] sm:$0xff]
    %v161 = vld [vmem:[#allocation2 + $0x254] sm:$0xf]
    %v162 = vld [vmem:[#allocation2 + $0x258] sm:$0xff]
    %v163 = vld [vmem:[#allocation2 + $0x260] sm:$0xf]
    %v164 = vld [vmem:[#allocation2 + $0x264] sm:$0xff]
    %v165 = vld [vmem:[#allocation2 + $0x26c] sm:$0xf]
    %v166 = vld [vmem:[#allocation2 + $0x270] sm:$0xff]
    %v167 = vld [vmem:[#allocation2 + $0x278] sm:$0xf]
    %v168 = vld [vmem:[#allocation2 + $0x27c] sm:$0xff]
    %v169 = vld [vmem:[#allocation2 + $0x284] sm:$0xf]
    %v170 = vld [vmem:[#allocation2 + $0x288] sm:$0xff]
    %v171 = vld [vmem:[#allocation2 + $0x290] sm:$0xf]
    %v172 = vld [vmem:[#allocation2 + $0x294] sm:$0xff]
    %v173 = vld [vmem:[#allocation2 + $0x29c] sm:$0xf]
    %v174 = vld [vmem:[#allocation2 + $0x2a0] sm:$0xff]
    %v175 = vld [vmem:[#allocation2 + $0x2a8] sm:$0xf]
    %v176 = vld [vmem:[#allocation2 + $0x2ac] sm:$0xff]
    %v177 = vld [vmem:[#allocation2 + $0x2b4] sm:$0xf]
    %v178 = vld [vmem:[#allocation2 + $0x2b8] sm:$0xff]
    %v179 = vld [vmem:[#allocation2 + $0x2c0] sm:$0xf]
    %v180 = vld [vmem:[#allocation2 + $0x2c4] sm:$0xff]
    %v181 = vld [vmem:[#allocation2 + $0x2cc] sm:$0xf]
    %v182 = vld [vmem:[#allocation2 + $0x2d0] sm:$0xff]
    %v183 = vld [vmem:[#allocation2 + $0x2d8] sm:$0xf]
    %v184 = vld [vmem:[#allocation2 + $0x2dc] sm:$0xff]
    %v185 = vld [vmem:[#allocation2 + $0x2e4] sm:$0xf]
    %v186 = vld [vmem:[#allocation2 + $0x2e8] sm:$0xff]
    %v187 = vld [vmem:[#allocation2 + $0x2f0] sm:$0xf]
    %v188 = vld [vmem:[#allocation2 + $0x2f4] sm:$0xff]
    %v189 = vld [vmem:[#allocation2 + $0x2fc] sm:$0xf]
    %v190 = vld [vmem:[#allocation2 + $0x300] sm:$0xff]
    %v191 = vld [vmem:[#allocation2 + $0x308] sm:$0xf]
    %v192 = vld [vmem:[#allocation2 + $0x30c] sm:$0xff]
    %v193 = vld [vmem:[#allocation2 + $0x314] sm:$0xf]
    %v194 = vld [vmem:[#allocation2 + $0x318] sm:$0xff]
    %v195 = vld [vmem:[#allocation2 + $0x320] sm:$0xf]
    %v196 = vld [vmem:[#allocation2 + $0x324] sm:$0xff]
    %v197 = vld [vmem:[#allocation2 + $0x32c] sm:$0xf]
    %v198 = vld [vmem:[#allocation2 + $0x330] sm:$0xff]
    %v199 = vld [vmem:[#allocation2 + $0x338] sm:$0xf]
    %v200 = vld [vmem:[#allocation2 + $0x33c] sm:$0xff]
    %v201 = vld [vmem:[#allocation2 + $0x344] sm:$0xf]
    %v202 = vld [vmem:[#allocation2 + $0x348] sm:$0xff]
    %v203 = vld [vmem:[#allocation2 + $0x350] sm:$0xf]
    %v204 = vld [vmem:[#allocation2 + $0x354] sm:$0xff]
    %v205 = vld [vmem:[#allocation2 + $0x35c] sm:$0xf]
    %v206 = vld [vmem:[#allocation2 + $0x360] sm:$0xff]
    %v207 = vld [vmem:[#allocation2 + $0x368] sm:$0xf]
    %v208 = vld [vmem:[#allocation2 + $0x36c] sm:$0xff]
    %v209 = vld [vmem:[#allocation2 + $0x374] sm:$0xf]
    %v210 = vld [vmem:[#allocation2 + $0x378] sm:$0xff]
    %v211 = vld [vmem:[#allocation2 + $0x380] sm:$0xf]
    %v212 = vld [vmem:[#allocation2 + $0x384] sm:$0xff]
    %v213 = vld [vmem:[#allocation2 + $0x38c] sm:$0xf]
    %v214 = vld [vmem:[#allocation2 + $0x390] sm:$0xff]
    %v215 = vld [vmem:[#allocation2 + $0x398] sm:$0xf]
    %v216 = vld [vmem:[#allocation2 + $0x39c] sm:$0xff]
    %v217 = vld [vmem:[#allocation2 + $0x3a4] sm:$0xf]
    %v218 = vld [vmem:[#allocation2 + $0x3a8] sm:$0xff]
    %v219 = vld [vmem:[#allocation2 + $0x3b0] sm:$0xf]
    %v220 = vld [vmem:[#allocation2 + $0x3b4] sm:$0xff]
    %v221 = vld [vmem:[#allocation2 + $0x3bc] sm:$0xf]
    %v222 = vld [vmem:[#allocation2 + $0x3c0] sm:$0xff]
    %v223 = vld [vmem:[#allocation2 + $0x3c8] sm:$0xf]
    %v224 = vld [vmem:[#allocation2 + $0x3cc] sm:$0xff]
    %v225 = vld [vmem:[#allocation2 + $0x3d4] sm:$0xf]
    %v226 = vld [vmem:[#allocation2 + $0x3d8] sm:$0xff]
    %v227 = vld [vmem:[#allocation2 + $0x3e0] sm:$0xf]
    %v228 = vld [vmem:[#allocation2 + $0x3e4] sm:$0xff]
    %v229 = vld [vmem:[#allocation2 + $0x3ec] sm:$0xf]
    %v230 = vld [vmem:[#allocation2 + $0x3f0] sm:$0xff]
    %v231 = vld [vmem:[#allocation2 + $0x3f8] sm:$0xf]
    %v232 = vld [vmem:[#allocation2 + $0x3fc] sm:$0xff]
    %v233 = vld [vmem:[#allocation2 + $0x404] sm:$0xf]
    %v234 = vld [vmem:[#allocation2 + $0x408] sm:$0xff]
    %v235 = vld [vmem:[#allocation2 + $0x410] sm:$0xf]
    %v236 = vld [vmem:[#allocation2 + $0x414] sm:$0xff]
    %v237 = vld [vmem:[#allocation2 + $0x41c] sm:$0xf]
    %v238 = vld [vmem:[#allocation2 + $0x420] sm:$0xff]
    %v239 = vld [vmem:[#allocation2 + $0x428] sm:$0xf]
    %v240 = vld [vmem:[#allocation2 + $0x42c] sm:$0xff]
    %v241 = vld [vmem:[#allocation2 + $0x434] sm:$0xf]
    %v242 = vld [vmem:[#allocation2 + $0x438] sm:$0xff]
    %v243 = vld [vmem:[#allocation2 + $0x440] sm:$0xf]
    %v244 = vld [vmem:[#allocation2 + $0x444] sm:$0xff]
    %v245 = vld [vmem:[#allocation2 + $0x44c] sm:$0xf]
    %v246 = vld [vmem:[#allocation2 + $0x450] sm:$0xff]
    %v247 = vld [vmem:[#allocation2 + $0x458] sm:$0xf]
    %v248 = vld [vmem:[#allocation2 + $0x45c] sm:$0xff]
    %v249 = vld [vmem:[#allocation2 + $0x464] sm:$0xf]
    %v250 = vld [vmem:[#allocation2 + $0x468] sm:$0xff]
    %v251 = vld [vmem:[#allocation2 + $0x470] sm:$0xf]
    %v252 = vld [vmem:[#allocation2 + $0x474] sm:$0xff]
    %v253 = vld [vmem:[#allocation2 + $0x47c] sm:$0xf]
    %v255 = vlaneseq
    %v256 = vshrl.u32 %v255, 7
    %v257 = vsub.s32 0, %v256
    %v258 = vrot.slane %v56, %v257
    %v259 = vlaneseq
    %v260 = vshrl.u32 %v259, 7
    %v261 = vsub.s32 1, %v260
    %v262 = vrot.slane %v56, %v261
    %v263 = vlaneseq
    %v264 = vshrl.u32 %v263, 7
    %v265 = vsub.s32 2, %v264
    %v266 = vrot.slane %v56, %v265
    %v273 = vunpack.c.l.b16 %v59
    %v274 = vunpack.c.h.b16 %v59
    %v275 = vunpack.c.l.b16 %v60
    %v276 = vunpack.c.h.b16 %v60
    %v277 = vunpack.c.l.b16 %v61
    %v278 = vunpack.c.h.b16 %v61
    %v279 = vpack.c.b16 %v273, %v273
    %v280 = vpack.c.b16 %v274, %v274
    %v281 = vpack.c.b16 %v275, %v275
    %v282 = vpack.c.b16 %v276, %v276
    %v283 = vpack.c.b16 %v277, %v277
    %v284 = vpack.c.b16 %v278, %v278
    %v483 = vunpack.c.l.b16 %v62
    %v484 = vunpack.c.h.b16 %v62
    %v485 = vunpack.c.l.b16 %v63
    %v486 = vunpack.c.l.b16 %v64
    %v487 = vunpack.c.h.b16 %v64
    %v488 = vunpack.c.l.b16 %v65
    %v489 = vunpack.c.l.b16 %v66
    %v490 = vunpack.c.h.b16 %v66
    %v491 = vunpack.c.l.b16 %v67
    %v492 = vunpack.c.l.b16 %v68
    %v493 = vunpack.c.h.b16 %v68
    %v494 = vunpack.c.l.b16 %v69
    %v495 = vunpack.c.l.b16 %v70
    %v496 = vunpack.c.h.b16 %v70
    %v497 = vunpack.c.l.b16 %v71
    %v498 = vunpack.c.l.b16 %v72
    %v499 = vunpack.c.h.b16 %v72
    %v500 = vunpack.c.l.b16 %v73
    %v501 = vunpack.c.l.b16 %v74
    %v502 = vunpack.c.h.b16 %v74
    %v503 = vunpack.c.l.b16 %v75
    %v504 = vunpack.c.l.b16 %v76
    %v505 = vunpack.c.h.b16 %v76
    %v506 = vunpack.c.l.b16 %v77
    %v507 = vunpack.c.l.b16 %v78
    %v508 = vunpack.c.h.b16 %v78
    %v509 = vunpack.c.l.b16 %v79
    %v510 = vunpack.c.l.b16 %v80
    %v511 = vunpack.c.h.b16 %v80
    %v512 = vunpack.c.l.b16 %v81
    %v513 = vunpack.c.l.b16 %v82
    %v514 = vunpack.c.h.b16 %v82
    %v515 = vunpack.c.l.b16 %v83
    %v516 = vunpack.c.l.b16 %v84
    %v517 = vunpack.c.h.b16 %v84
    %v518 = vunpack.c.l.b16 %v85
    %v519 = vunpack.c.l.b16 %v86
    %v520 = vunpack.c.h.b16 %v86
    %v521 = vunpack.c.l.b16 %v87
    %v522 = vunpack.c.l.b16 %v88
    %v523 = vunpack.c.h.b16 %v88
    %v524 = vunpack.c.l.b16 %v89
    %v525 = vunpack.c.l.b16 %v90
    %v526 = vunpack.c.h.b16 %v90
    %v527 = vunpack.c.l.b16 %v91
    %v528 = vunpack.c.l.b16 %v92
    %v529 = vunpack.c.h.b16 %v92
    %v530 = vunpack.c.l.b16 %v93
    %v531 = vunpack.c.l.b16 %v94
    %v532 = vunpack.c.h.b16 %v94
    %v533 = vunpack.c.l.b16 %v95
    %v534 = vunpack.c.l.b16 %v96
    %v535 = vunpack.c.h.b16 %v96
    %v536 = vunpack.c.l.b16 %v97
    %v537 = vunpack.c.l.b16 %v98
    %v538 = vunpack.c.h.b16 %v98
    %v539 = vunpack.c.l.b16 %v99
    %v540 = vunpack.c.l.b16 %v100
    %v541 = vunpack.c.h.b16 %v100
    %v542 = vunpack.c.l.b16 %v101
    %v543 = vunpack.c.l.b16 %v102
    %v544 = vunpack.c.h.b16 %v102
    %v545 = vunpack.c.l.b16 %v103
    %v546 = vunpack.c.l.b16 %v104
    %v547 = vunpack.c.h.b16 %v104
    %v548 = vunpack.c.l.b16 %v105
    %v549 = vunpack.c.l.b16 %v106
    %v550 = vunpack.c.h.b16 %v106
    %v551 = vunpack.c.l.b16 %v107
    %v552 = vunpack.c.l.b16 %v108
    %v553 = vunpack.c.h.b16 %v108
    %v554 = vunpack.c.l.b16 %v109
    %v555 = vunpack.c.l.b16 %v110
    %v556 = vunpack.c.h.b16 %v110
    %v557 = vunpack.c.l.b16 %v111
    %v558 = vunpack.c.l.b16 %v112
    %v559 = vunpack.c.h.b16 %v112
    %v560 = vunpack.c.l.b16 %v113
    %v561 = vunpack.c.l.b16 %v114
    %v562 = vunpack.c.h.b16 %v114
    %v563 = vunpack.c.l.b16 %v115
    %v564 = vunpack.c.l.b16 %v116
    %v565 = vunpack.c.h.b16 %v116
    %v566 = vunpack.c.l.b16 %v117
    %v567 = vunpack.c.l.b16 %v118
    %v568 = vunpack.c.h.b16 %v118
    %v569 = vunpack.c.l.b16 %v119
    %v570 = vunpack.c.l.b16 %v120
    %v571 = vunpack.c.h.b16 %v120
    %v572 = vunpack.c.l.b16 %v121
    %v573 = vunpack.c.l.b16 %v122
    %v574 = vunpack.c.h.b16 %v122
    %v575 = vunpack.c.l.b16 %v123
    %v576 = vunpack.c.l.b16 %v124
    %v577 = vunpack.c.h.b16 %v124
    %v578 = vunpack.c.l.b16 %v125
    %v579 = vunpack.c.l.b16 %v126
    %v580 = vunpack.c.h.b16 %v126
    %v581 = vunpack.c.l.b16 %v127
    %v582 = vunpack.c.l.b16 %v128
    %v583 = vunpack.c.h.b16 %v128
    %v584 = vunpack.c.l.b16 %v129
    %v585 = vunpack.c.l.b16 %v130
    %v586 = vunpack.c.h.b16 %v130
    %v587 = vunpack.c.l.b16 %v131
    %v588 = vunpack.c.l.b16 %v132
    %v589 = vunpack.c.h.b16 %v132
    %v590 = vunpack.c.l.b16 %v133
    %v591 = vunpack.c.l.b16 %v134
    %v592 = vunpack.c.h.b16 %v134
    %v593 = vunpack.c.l.b16 %v135
    %v594 = vunpack.c.l.b16 %v136
    %v595 = vunpack.c.h.b16 %v136
    %v596 = vunpack.c.l.b16 %v137
    %v597 = vunpack.c.l.b16 %v138
    %v598 = vunpack.c.h.b16 %v138
    %v599 = vunpack.c.l.b16 %v139
    %v600 = vunpack.c.l.b16 %v140
    %v601 = vunpack.c.h.b16 %v140
    %v602 = vunpack.c.l.b16 %v141
    %v603 = vunpack.c.l.b16 %v142
    %v604 = vunpack.c.h.b16 %v142
    %v605 = vunpack.c.l.b16 %v143
    %v606 = vunpack.c.l.b16 %v144
    %v607 = vunpack.c.h.b16 %v144
    %v608 = vunpack.c.l.b16 %v145
    %v609 = vunpack.c.l.b16 %v146
    %v610 = vunpack.c.h.b16 %v146
    %v611 = vunpack.c.l.b16 %v147
    %v612 = vunpack.c.l.b16 %v148
    %v613 = vunpack.c.h.b16 %v148
    %v614 = vunpack.c.l.b16 %v149
    %v615 = vunpack.c.l.b16 %v150
    %v616 = vunpack.c.h.b16 %v150
    %v617 = vunpack.c.l.b16 %v151
    %v618 = vunpack.c.l.b16 %v152
    %v619 = vunpack.c.h.b16 %v152
    %v620 = vunpack.c.l.b16 %v153
    %v621 = vunpack.c.l.b16 %v154
    %v622 = vunpack.c.h.b16 %v154
    %v623 = vunpack.c.l.b16 %v155
    %v624 = vunpack.c.l.b16 %v156
    %v625 = vunpack.c.h.b16 %v156
    %v626 = vunpack.c.l.b16 %v157
    %v627 = vunpack.c.l.b16 %v158
    %v628 = vunpack.c.h.b16 %v158
    %v629 = vunpack.c.l.b16 %v159
    %v630 = vunpack.c.l.b16 %v160
    %v631 = vunpack.c.h.b16 %v160
    %v632 = vunpack.c.l.b16 %v161
    %v633 = vunpack.c.l.b16 %v162
    %v634 = vunpack.c.h.b16 %v162
    %v635 = vunpack.c.l.b16 %v163
    %v636 = vunpack.c.l.b16 %v164
    %v637 = vunpack.c.h.b16 %v164
    %v638 = vunpack.c.l.b16 %v165
    %v639 = vunpack.c.l.b16 %v166
    %v640 = vunpack.c.h.b16 %v166
    %v641 = vunpack.c.l.b16 %v167
    %v642 = vunpack.c.l.b16 %v168
    %v643 = vunpack.c.h.b16 %v168
    %v644 = vunpack.c.l.b16 %v169
    %v645 = vunpack.c.l.b16 %v170
    %v646 = vunpack.c.h.b16 %v170
    %v647 = vunpack.c.l.b16 %v171
    %v648 = vunpack.c.l.b16 %v172
    %v649 = vunpack.c.h.b16 %v172
    %v650 = vunpack.c.l.b16 %v173
    %v651 = vunpack.c.l.b16 %v174
    %v652 = vunpack.c.h.b16 %v174
    %v653 = vunpack.c.l.b16 %v175
    %v654 = vunpack.c.l.b16 %v176
    %v655 = vunpack.c.h.b16 %v176
    %v656 = vunpack.c.l.b16 %v177
    %v657 = vunpack.c.l.b16 %v178
    %v658 = vunpack.c.h.b16 %v178
    %v659 = vunpack.c.l.b16 %v179
    %v660 = vunpack.c.l.b16 %v180
    %v661 = vunpack.c.h.b16 %v180
    %v662 = vunpack.c.l.b16 %v181
    %v663 = vunpack.c.l.b16 %v182
    %v664 = vunpack.c.h.b16 %v182
    %v665 = vunpack.c.l.b16 %v183
    %v666 = vunpack.c.l.b16 %v184
    %v667 = vunpack.c.h.b16 %v184
    %v668 = vunpack.c.l.b16 %v185
    %v669 = vunpack.c.l.b16 %v186
    %v670 = vunpack.c.h.b16 %v186
    %v671 = vunpack.c.l.b16 %v187
    %v672 = vunpack.c.l.b16 %v188
    %v673 = vunpack.c.h.b16 %v188
    %v674 = vunpack.c.l.b16 %v189
    %v675 = vunpack.c.l.b16 %v190
    %v676 = vunpack.c.h.b16 %v190
    %v677 = vunpack.c.l.b16 %v191
    %v678 = vunpack.c.l.b16 %v192
    %v679 = vunpack.c.h.b16 %v192
    %v680 = vunpack.c.l.b16 %v193
    %v681 = vunpack.c.l.b16 %v194
    %v682 = vunpack.c.h.b16 %v194
    %v683 = vunpack.c.l.b16 %v195
    %v684 = vunpack.c.l.b16 %v196
    %v685 = vunpack.c.h.b16 %v196
    %v686 = vunpack.c.l.b16 %v197
    %v687 = vunpack.c.l.b16 %v198
    %v688 = vunpack.c.h.b16 %v198
    %v689 = vunpack.c.l.b16 %v199
    %v690 = vunpack.c.l.b16 %v200
    %v691 = vunpack.c.h.b16 %v200
    %v692 = vunpack.c.l.b16 %v201
    %v693 = vunpack.c.l.b16 %v202
    %v694 = vunpack.c.h.b16 %v202
    %v695 = vunpack.c.l.b16 %v203
    %v696 = vunpack.c.l.b16 %v204
    %v697 = vunpack.c.h.b16 %v204
    %v698 = vunpack.c.l.b16 %v205
    %v699 = vunpack.c.l.b16 %v206
    %v700 = vunpack.c.h.b16 %v206
    %v701 = vunpack.c.l.b16 %v207
    %v702 = vunpack.c.l.b16 %v208
    %v703 = vunpack.c.h.b16 %v208
    %v704 = vunpack.c.l.b16 %v209
    %v705 = vunpack.c.l.b16 %v210
    %v706 = vunpack.c.h.b16 %v210
    %v707 = vunpack.c.l.b16 %v211
    %v708 = vunpack.c.l.b16 %v212
    %v709 = vunpack.c.h.b16 %v212
    %v710 = vunpack.c.l.b16 %v213
    %v711 = vunpack.c.l.b16 %v214
    %v712 = vunpack.c.h.b16 %v214
    %v713 = vunpack.c.l.b16 %v215
    %v714 = vunpack.c.l.b16 %v216
    %v715 = vunpack.c.h.b16 %v216
    %v716 = vunpack.c.l.b16 %v217
    %v717 = vunpack.c.l.b16 %v218
    %v718 = vunpack.c.h.b16 %v218
    %v719 = vunpack.c.l.b16 %v219
    %v720 = vunpack.c.l.b16 %v220
    %v721 = vunpack.c.h.b16 %v220
    %v722 = vunpack.c.l.b16 %v221
    %v723 = vunpack.c.l.b16 %v222
    %v724 = vunpack.c.h.b16 %v222
    %v725 = vunpack.c.l.b16 %v223
    %v726 = vunpack.c.l.b16 %v224
    %v727 = vunpack.c.h.b16 %v224
    %v728 = vunpack.c.l.b16 %v225
    %v729 = vunpack.c.l.b16 %v226
    %v730 = vunpack.c.h.b16 %v226
    %v731 = vunpack.c.l.b16 %v227
    %v732 = vunpack.c.l.b16 %v228
    %v733 = vunpack.c.h.b16 %v228
    %v734 = vunpack.c.l.b16 %v229
    %v735 = vunpack.c.l.b16 %v230
    %v736 = vunpack.c.h.b16 %v230
    %v737 = vunpack.c.l.b16 %v231
    %v738 = vunpack.c.l.b16 %v232
    %v739 = vunpack.c.h.b16 %v232
    %v740 = vunpack.c.l.b16 %v233
    %v741 = vunpack.c.l.b16 %v234
    %v742 = vunpack.c.h.b16 %v234
    %v743 = vunpack.c.l.b16 %v235
    %v744 = vunpack.c.l.b16 %v236
    %v745 = vunpack.c.h.b16 %v236
    %v746 = vunpack.c.l.b16 %v237
    %v747 = vunpack.c.l.b16 %v238
    %v748 = vunpack.c.h.b16 %v238
    %v749 = vunpack.c.l.b16 %v239
    %v750 = vunpack.c.l.b16 %v240
    %v751 = vunpack.c.h.b16 %v240
    %v752 = vunpack.c.l.b16 %v241
    %v753 = vunpack.c.l.b16 %v242
    %v754 = vunpack.c.h.b16 %v242
    %v755 = vunpack.c.l.b16 %v243
    %v756 = vunpack.c.l.b16 %v244
    %v757 = vunpack.c.h.b16 %v244
    %v758 = vunpack.c.l.b16 %v245
    %v759 = vunpack.c.l.b16 %v246
    %v760 = vunpack.c.h.b16 %v246
    %v761 = vunpack.c.l.b16 %v247
    %v762 = vunpack.c.l.b16 %v248
    %v763 = vunpack.c.h.b16 %v248
    %v764 = vunpack.c.l.b16 %v249
    %v765 = vunpack.c.l.b16 %v250
    %v766 = vunpack.c.h.b16 %v250
    %v767 = vunpack.c.l.b16 %v251
    %v768 = vunpack.c.l.b16 %v252
    %v769 = vunpack.c.h.b16 %v252
    %v770 = vunpack.c.l.b16 %v253
    %v771 = vpack.c.b16 %v486, %v483
    %v772 = vpack.c.b16 %v487, %v484
    %v773 = vpack.c.b16 %v488, %v485
    %v774 = vpack.c.b16 %v492, %v489
    %v775 = vpack.c.b16 %v493, %v490
    %v776 = vpack.c.b16 %v494, %v491
    %v777 = vpack.c.b16 %v498, %v495
    %v778 = vpack.c.b16 %v499, %v496
    %v779 = vpack.c.b16 %v500, %v497
    %v780 = vpack.c.b16 %v504, %v501
    %v781 = vpack.c.b16 %v505, %v502
    %v782 = vpack.c.b16 %v506, %v503
    %v783 = vpack.c.b16 %v510, %v507
    %v784 = vpack.c.b16 %v511, %v508
    %v785 = vpack.c.b16 %v512, %v509
    %v786 = vpack.c.b16 %v516, %v513
    %v787 = vpack.c.b16 %v517, %v514
    %v788 = vpack.c.b16 %v518, %v515
    %v789 = vpack.c.b16 %v522, %v519
    %v790 = vpack.c.b16 %v523, %v520
    %v791 = vpack.c.b16 %v524, %v521
    %v792 = vpack.c.b16 %v528, %v525
    %v793 = vpack.c.b16 %v529, %v526
    %v794 = vpack.c.b16 %v530, %v527
    %v795 = vpack.c.b16 %v534, %v531
    %v796 = vpack.c.b16 %v535, %v532
    %v797 = vpack.c.b16 %v536, %v533
    %v798 = vpack.c.b16 %v540, %v537
    %v799 = vpack.c.b16 %v541, %v538
    %v800 = vpack.c.b16 %v542, %v539
    %v801 = vpack.c.b16 %v546, %v543
    %v802 = vpack.c.b16 %v547, %v544
    %v803 = vpack.c.b16 %v548, %v545
    %v804 = vpack.c.b16 %v552, %v549
    %v805 = vpack.c.b16 %v553, %v550
    %v806 = vpack.c.b16 %v554, %v551
    %v807 = vpack.c.b16 %v558, %v555
    %v808 = vpack.c.b16 %v559, %v556
    %v809 = vpack.c.b16 %v560, %v557
    %v810 = vpack.c.b16 %v564, %v561
    %v811 = vpack.c.b16 %v565, %v562
    %v812 = vpack.c.b16 %v566, %v563
    %v813 = vpack.c.b16 %v570, %v567
    %v814 = vpack.c.b16 %v571, %v568
    %v815 = vpack.c.b16 %v572, %v569
    %v816 = vpack.c.b16 %v576, %v573
    %v817 = vpack.c.b16 %v577, %v574
    %v818 = vpack.c.b16 %v578, %v575
    %v819 = vpack.c.b16 %v582, %v579
    %v820 = vpack.c.b16 %v583, %v580
    %v821 = vpack.c.b16 %v584, %v581
    %v822 = vpack.c.b16 %v588, %v585
    %v823 = vpack.c.b16 %v589, %v586
    %v824 = vpack.c.b16 %v590, %v587
    %v825 = vpack.c.b16 %v594, %v591
    %v826 = vpack.c.b16 %v595, %v592
    %v827 = vpack.c.b16 %v596, %v593
    %v828 = vpack.c.b16 %v600, %v597
    %v829 = vpack.c.b16 %v601, %v598
    %v830 = vpack.c.b16 %v602, %v599
    %v831 = vpack.c.b16 %v606, %v603
    %v832 = vpack.c.b16 %v607, %v604
    %v833 = vpack.c.b16 %v608, %v605
    %v834 = vpack.c.b16 %v612, %v609
    %v835 = vpack.c.b16 %v613, %v610
    %v836 = vpack.c.b16 %v614, %v611
    %v837 = vpack.c.b16 %v618, %v615
    %v838 = vpack.c.b16 %v619, %v616
    %v839 = vpack.c.b16 %v620, %v617
    %v840 = vpack.c.b16 %v624, %v621
    %v841 = vpack.c.b16 %v625, %v622
    %v842 = vpack.c.b16 %v626, %v623
    %v843 = vpack.c.b16 %v630, %v627
    %v844 = vpack.c.b16 %v631, %v628
    %v845 = vpack.c.b16 %v632, %v629
    %v846 = vpack.c.b16 %v636, %v633
    %v847 = vpack.c.b16 %v637, %v634
    %v848 = vpack.c.b16 %v638, %v635
    %v849 = vpack.c.b16 %v642, %v639
    %v850 = vpack.c.b16 %v643, %v640
    %v851 = vpack.c.b16 %v644, %v641
    %v852 = vpack.c.b16 %v648, %v645
    %v853 = vpack.c.b16 %v649, %v646
    %v854 = vpack.c.b16 %v650, %v647
    %v855 = vpack.c.b16 %v654, %v651
    %v856 = vpack.c.b16 %v655, %v652
    %v857 = vpack.c.b16 %v656, %v653
    %v858 = vpack.c.b16 %v660, %v657
    %v859 = vpack.c.b16 %v661, %v658
    %v860 = vpack.c.b16 %v662, %v659
    %v861 = vpack.c.b16 %v666, %v663
    %v862 = vpack.c.b16 %v667, %v664
    %v863 = vpack.c.b16 %v668, %v665
    %v864 = vpack.c.b16 %v672, %v669
    %v865 = vpack.c.b16 %v673, %v670
    %v866 = vpack.c.b16 %v674, %v671
    %v867 = vpack.c.b16 %v678, %v675
    %v868 = vpack.c.b16 %v679, %v676
    %v869 = vpack.c.b16 %v680, %v677
    %v870 = vpack.c.b16 %v684, %v681
    %v871 = vpack.c.b16 %v685, %v682
    %v872 = vpack.c.b16 %v686, %v683
    %v873 = vpack.c.b16 %v690, %v687
    %v874 = vpack.c.b16 %v691, %v688
    %v875 = vpack.c.b16 %v692, %v689
    %v876 = vpack.c.b16 %v696, %v693
    %v877 = vpack.c.b16 %v697, %v694
    %v878 = vpack.c.b16 %v698, %v695
    %v879 = vpack.c.b16 %v702, %v699
    %v880 = vpack.c.b16 %v703, %v700
    %v881 = vpack.c.b16 %v704, %v701
    %v882 = vpack.c.b16 %v708, %v705
    %v883 = vpack.c.b16 %v709, %v706
    %v884 = vpack.c.b16 %v710, %v707
    %v885 = vpack.c.b16 %v714, %v711
    %v886 = vpack.c.b16 %v715, %v712
    %v887 = vpack.c.b16 %v716, %v713
    %v888 = vpack.c.b16 %v720, %v717
    %v889 = vpack.c.b16 %v721, %v718
    %v890 = vpack.c.b16 %v722, %v719
    %v891 = vpack.c.b16 %v726, %v723
    %v892 = vpack.c.b16 %v727, %v724
    %v893 = vpack.c.b16 %v728, %v725
    %v894 = vpack.c.b16 %v732, %v729
    %v895 = vpack.c.b16 %v733, %v730
    %v896 = vpack.c.b16 %v734, %v731
    %v897 = vpack.c.b16 %v738, %v735
    %v898 = vpack.c.b16 %v739, %v736
    %v899 = vpack.c.b16 %v740, %v737
    %v900 = vpack.c.b16 %v744, %v741
    %v901 = vpack.c.b16 %v745, %v742
    %v902 = vpack.c.b16 %v746, %v743
    %v903 = vpack.c.b16 %v750, %v747
    %v904 = vpack.c.b16 %v751, %v748
    %v905 = vpack.c.b16 %v752, %v749
    %v906 = vpack.c.b16 %v756, %v753
    %v907 = vpack.c.b16 %v757, %v754
    %v908 = vpack.c.b16 %v758, %v755
    %v909 = vpack.c.b16 %v762, %v759
    %v910 = vpack.c.b16 %v763, %v760
    %v911 = vpack.c.b16 %v764, %v761
    %v912 = vpack.c.b16 %v768, %v765
    %v913 = vpack.c.b16 %v769, %v766
    %v914 = vpack.c.b16 %v770, %v767
    %1059 = vmatprep.subr.bf16.mxu0 %v793
    %1060 = vmatpush1.bf16.msra.mxu0 %v792
    %1061 = vmatprep.subr.bf16.mxu0 %v790
    %1062 = vmatpush1.bf16.msra.mxu0 %v789
    %1063 = vmatprep.subr.bf16.mxu0 %v787
    %1064 = vmatpush1.bf16.msra.mxu0 %v786
    %1065 = vmatprep.subr.bf16.mxu0 %v784
    %1066 = vmatpush1.bf16.msra.mxu0 %v783
    %1067 = vmatprep.subr.bf16.mxu0 %v781
    %1068 = vmatpush1.bf16.msra.mxu0 %v780
    %1069 = vmatprep.subr.bf16.mxu0 %v778
    %1070 = vmatpush1.bf16.msra.mxu0 %v777
    %1071 = vmatprep.subr.bf16.mxu0 %v775
    %1072 = vmatpush1.bf16.msra.mxu0 %v774
    %1073 = vmatprep.subr.bf16.mxu0 %v772
    %1074 = vmatpush1.bf16.msra.mxu0 %v771
    %1075 = vmatprep.subr.bf16.mxu0 %v817
    %1076 = vmatpush2.bf16.msra.mxu0 %v816
    %1077 = vmatprep.subr.bf16.mxu0 %v814
    %1078 = vmatpush2.bf16.msra.mxu0 %v813
    %1079 = vmatprep.subr.bf16.mxu0 %v811
    %1080 = vmatpush2.bf16.msra.mxu0 %v810
    %1081 = vmatprep.subr.bf16.mxu0 %v808
    %1082 = vmatpush2.bf16.msra.mxu0 %v807
    %1083 = vmatprep.subr.bf16.mxu0 %v805
    %1084 = vmatpush2.bf16.msra.mxu0 %v804
    %1085 = vmatprep.subr.bf16.mxu0 %v802
    %1086 = vmatpush2.bf16.msra.mxu0 %v801
    %1087 = vmatprep.subr.bf16.mxu0 %v799
    %1088 = vmatpush2.bf16.msra.mxu0 %v798
    %1089 = vmatprep.subr.bf16.mxu0 %v796
    %1090 = vmatpush2.bf16.msra.mxu0 %v795
    %1091 = vmatprep.mubr.bf16.mxu0 %v280
    %1092 = vmatmul.mubr.bf16.gmra.mxu0 %v279
    %v1093 = vpop.f32.mrf.mxu0
    %v1094 = vadd.f32 %v258, %v1093
    %v1095 = vpop.f32.mrf.mxu0
    %v1096 = vadd.f32 %v262, %v1095
    %v1097 = vpop.f32.mrf.mxu0
    %v1098 = vpop.f32.mrf.mxu0
    %1099 = vdwg.mxu0
    %1100 = vmatprep.subr.bf16.mxu0 %v841
    %1101 = vmatpush1.bf16.msra.mxu0 %v840
    %1102 = vmatprep.subr.bf16.mxu0 %v838
    %1103 = vmatpush1.bf16.msra.mxu0 %v837
    %1104 = vmatprep.subr.bf16.mxu0 %v835
    %1105 = vmatpush1.bf16.msra.mxu0 %v834
    %1106 = vmatprep.subr.bf16.mxu0 %v832
    %1107 = vmatpush1.bf16.msra.mxu0 %v831
    %1108 = vmatprep.subr.bf16.mxu0 %v829
    %1109 = vmatpush1.bf16.msra.mxu0 %v828
    %1110 = vmatprep.subr.bf16.mxu0 %v826
    %1111 = vmatpush1.bf16.msra.mxu0 %v825
    %1112 = vmatprep.subr.bf16.mxu0 %v823
    %1113 = vmatpush1.bf16.msra.mxu0 %v822
    %1114 = vmatprep.subr.bf16.mxu0 %v820
    %1115 = vmatpush1.bf16.msra.mxu0 %v819
    %1116 = vmatprep.subr.bf16.mxu0 %v865
    %1117 = vmatpush2.bf16.msra.mxu0 %v864
    %1118 = vmatprep.subr.bf16.mxu0 %v862
    %1119 = vmatpush2.bf16.msra.mxu0 %v861
    %1120 = vmatprep.subr.bf16.mxu0 %v859
    %1121 = vmatpush2.bf16.msra.mxu0 %v858
    %1122 = vmatprep.subr.bf16.mxu0 %v856
    %1123 = vmatpush2.bf16.msra.mxu0 %v855
    %1124 = vmatprep.subr.bf16.mxu0 %v853
    %1125 = vmatpush2.bf16.msra.mxu0 %v852
    %1126 = vmatprep.subr.bf16.mxu0 %v850
    %1127 = vmatpush2.bf16.msra.mxu0 %v849
    %1128 = vmatprep.subr.bf16.mxu0 %v847
    %1129 = vmatpush2.bf16.msra.mxu0 %v846
    %1130 = vmatprep.subr.bf16.mxu0 %v844
    %1131 = vmatpush2.bf16.msra.mxu0 %v843
    %1132 = vmatprep.mubr.bf16.mxu0 %v282
    %1133 = vmatmul.mubr.bf16.gmra.mxu0 %v281
    %v1134 = vpop.f32.mrf.mxu0
    %v1135 = vadd.f32 %v1094, %v1134
    %v1136 = vpop.f32.mrf.mxu0
    %v1137 = vadd.f32 %v1096, %v1136
    %v1138 = vpop.f32.mrf.mxu0
    %v1139 = vpop.f32.mrf.mxu0
    %1140 = vdwg.mxu0
    %1141 = vmatprep.subr.bf16.mxu0 %v889
    %1142 = vmatpush1.bf16.msra.mxu0 %v888
    %1143 = vmatprep.subr.bf16.mxu0 %v886
    %1144 = vmatpush1.bf16.msra.mxu0 %v885
    %1145 = vmatprep.subr.bf16.mxu0 %v883
    %1146 = vmatpush1.bf16.msra.mxu0 %v882
    %1147 = vmatprep.subr.bf16.mxu0 %v880
    %1148 = vmatpush1.bf16.msra.mxu0 %v879
    %1149 = vmatprep.subr.bf16.mxu0 %v877
    %1150 = vmatpush1.bf16.msra.mxu0 %v876
    %1151 = vmatprep.subr.bf16.mxu0 %v874
    %1152 = vmatpush1.bf16.msra.mxu0 %v873
    %1153 = vmatprep.subr.bf16.mxu0 %v871
    %1154 = vmatpush1.bf16.msra.mxu0 %v870
    %1155 = vmatprep.subr.bf16.mxu0 %v868
    %1156 = vmatpush1.bf16.msra.mxu0 %v867
    %1157 = vmatprep.subr.bf16.mxu0 %v913
    %1158 = vmatpush2.bf16.msra.mxu0 %v912
    %1159 = vmatprep.subr.bf16.mxu0 %v910
    %1160 = vmatpush2.bf16.msra.mxu0 %v909
    %1161 = vmatprep.subr.bf16.mxu0 %v907
    %1162 = vmatpush2.bf16.msra.mxu0 %v906
    %1163 = vmatprep.subr.bf16.mxu0 %v904
    %1164 = vmatpush2.bf16.msra.mxu0 %v903
    %1165 = vmatprep.subr.bf16.mxu0 %v901
    %1166 = vmatpush2.bf16.msra.mxu0 %v900
    %1167 = vmatprep.subr.bf16.mxu0 %v898
    %1168 = vmatpush2.bf16.msra.mxu0 %v897
    %1169 = vmatprep.subr.bf16.mxu0 %v895
    %1170 = vmatpush2.bf16.msra.mxu0 %v894
    %1171 = vmatprep.subr.bf16.mxu0 %v892
    %1172 = vmatpush2.bf16.msra.mxu0 %v891
    %1173 = vmatprep.mubr.bf16.mxu0 %v284
    %1174 = vmatmul.mubr.bf16.gmra.mxu0 %v283
    %v1175 = vpop.f32.mrf.mxu0
    %v1176 = vadd.f32 %v1135, %v1175
    %v1177 = vpop.f32.mrf.mxu0
    %v1178 = vadd.f32 %v1137, %v1177
    %v1179 = vpop.f32.mrf.mxu0
    %v1180 = vpop.f32.mrf.mxu0
    %1181 = vdwg.mxu0
    %1182 = vmatprep.subr.bf16.mxu0 0
    %1183 = vmatpush1.bf16.msra.mxu0 %v794
    %1184 = vmatprep.subr.bf16.mxu0 0
    %1185 = vmatpush1.bf16.msra.mxu0 %v791
    %1186 = vmatprep.subr.bf16.mxu0 0
    %1187 = vmatpush1.bf16.msra.mxu0 %v788
    %1188 = vmatprep.subr.bf16.mxu0 0
    %1189 = vmatpush1.bf16.msra.mxu0 %v785
    %1190 = vmatprep.subr.bf16.mxu0 0
    %1191 = vmatpush1.bf16.msra.mxu0 %v782
    %1192 = vmatprep.subr.bf16.mxu0 0
    %1193 = vmatpush1.bf16.msra.mxu0 %v779
    %1194 = vmatprep.subr.bf16.mxu0 0
    %1195 = vmatpush1.bf16.msra.mxu0 %v776
    %1196 = vmatprep.subr.bf16.mxu0 0
    %1197 = vmatpush1.bf16.msra.mxu0 %v773
    %1198 = vmatprep.subr.bf16.mxu0 0
    %1199 = vmatpush2.bf16.msra.mxu0 %v818
    %1200 = vmatprep.subr.bf16.mxu0 0
    %1201 = vmatpush2.bf16.msra.mxu0 %v815
    %1202 = vmatprep.subr.bf16.mxu0 0
    %1203 = vmatpush2.bf16.msra.mxu0 %v812
    %1204 = vmatprep.subr.bf16.mxu0 0
    %1205 = vmatpush2.bf16.msra.mxu0 %v809
    %1206 = vmatprep.subr.bf16.mxu0 0
    %1207 = vmatpush2.bf16.msra.mxu0 %v806
    %1208 = vmatprep.subr.bf16.mxu0 0
    %1209 = vmatpush2.bf16.msra.mxu0 %v803
    %1210 = vmatprep.subr.bf16.mxu0 0
    %1211 = vmatpush2.bf16.msra.mxu0 %v800
    %1212 = vmatprep.subr.bf16.mxu0 0
    %1213 = vmatpush2.bf16.msra.mxu0 %v797
    %1214 = vmatprep.mubr.bf16.mxu0 %v280
    %1215 = vmatmul.mubr.bf16.gmra.mxu0 %v279
    %v1216 = vpop.f32.mrf.mxu0
    %v1217 = vadd.f32 %v266, %v1216
    %v1218 = vpop.f32.mrf.mxu0
    %v1219 = vpop.f32.mrf.mxu0
    %v1220 = vpop.f32.mrf.mxu0
    %1221 = vdwg.mxu0
    %1222 = vmatprep.subr.bf16.mxu0 0
    %1223 = vmatpush1.bf16.msra.mxu0 %v842
    %1224 = vmatprep.subr.bf16.mxu0 0
    %1225 = vmatpush1.bf16.msra.mxu0 %v839
    %1226 = vmatprep.subr.bf16.mxu0 0
    %1227 = vmatpush1.bf16.msra.mxu0 %v836
    %1228 = vmatprep.subr.bf16.mxu0 0
    %1229 = vmatpush1.bf16.msra.mxu0 %v833
    %1230 = vmatprep.subr.bf16.mxu0 0
    %1231 = vmatpush1.bf16.msra.mxu0 %v830
    %1232 = vmatprep.subr.bf16.mxu0 0
    %1233 = vmatpush1.bf16.msra.mxu0 %v827
    %1234 = vmatprep.subr.bf16.mxu0 0
    %1235 = vmatpush1.bf16.msra.mxu0 %v824
    %1236 = vmatprep.subr.bf16.mxu0 0
    %1237 = vmatpush1.bf16.msra.mxu0 %v821
    %1238 = vmatprep.subr.bf16.mxu0 0
    %1239 = vmatpush2.bf16.msra.mxu0 %v866
    %1240 = vmatprep.subr.bf16.mxu0 0
    %1241 = vmatpush2.bf16.msra.mxu0 %v863
    %1242 = vmatprep.subr.bf16.mxu0 0
    %1243 = vmatpush2.bf16.msra.mxu0 %v860
    %1244 = vmatprep.subr.bf16.mxu0 0
    %1245 = vmatpush2.bf16.msra.mxu0 %v857
    %1246 = vmatprep.subr.bf16.mxu0 0
    %1247 = vmatpush2.bf16.msra.mxu0 %v854
    %1248 = vmatprep.subr.bf16.mxu0 0
    %1249 = vmatpush2.bf16.msra.mxu0 %v851
    %1250 = vmatprep.subr.bf16.mxu0 0
    %1251 = vmatpush2.bf16.msra.mxu0 %v848
    %1252 = vmatprep.subr.bf16.mxu0 0
    %1253 = vmatpush2.bf16.msra.mxu0 %v845
    %1254 = vmatprep.mubr.bf16.mxu0 %v282
    %1255 = vmatmul.mubr.bf16.gmra.mxu0 %v281
    %v1256 = vpop.f32.mrf.mxu0
    %v1257 = vadd.f32 %v1217, %v1256
    %v1258 = vpop.f32.mrf.mxu0
    %v1259 = vpop.f32.mrf.mxu0
    %v1260 = vpop.f32.mrf.mxu0
    %1261 = vdwg.mxu0
    %1262 = vmatprep.subr.bf16.mxu0 0
    %1263 = vmatpush1.bf16.msra.mxu0 %v890
    %1264 = vmatprep.subr.bf16.mxu0 0
    %1265 = vmatpush1.bf16.msra.mxu0 %v887
    %1266 = vmatprep.subr.bf16.mxu0 0
    %1267 = vmatpush1.bf16.msra.mxu0 %v884
    %1268 = vmatprep.subr.bf16.mxu0 0
    %1269 = vmatpush1.bf16.msra.mxu0 %v881
    %1270 = vmatprep.subr.bf16.mxu0 0
    %1271 = vmatpush1.bf16.msra.mxu0 %v878
    %1272 = vmatprep.subr.bf16.mxu0 0
    %1273 = vmatpush1.bf16.msra.mxu0 %v875
    %1274 = vmatprep.subr.bf16.mxu0 0
    %1275 = vmatpush1.bf16.msra.mxu0 %v872
    %1276 = vmatprep.subr.bf16.mxu0 0
    %1277 = vmatpush1.bf16.msra.mxu0 %v869
    %1278 = vmatprep.subr.bf16.mxu0 0
    %1279 = vmatpush2.bf16.msra.mxu0 %v914
    %1280 = vmatprep.subr.bf16.mxu0 0
    %1281 = vmatpush2.bf16.msra.mxu0 %v911
    %1282 = vmatprep.subr.bf16.mxu0 0
    %1283 = vmatpush2.bf16.msra.mxu0 %v908
    %1284 = vmatprep.subr.bf16.mxu0 0
    %1285 = vmatpush2.bf16.msra.mxu0 %v905
    %1286 = vmatprep.subr.bf16.mxu0 0
    %1287 = vmatpush2.bf16.msra.mxu0 %v902
    %1288 = vmatprep.subr.bf16.mxu0 0
    %1289 = vmatpush2.bf16.msra.mxu0 %v899
    %1290 = vmatprep.subr.bf16.mxu0 0
    %1291 = vmatpush2.bf16.msra.mxu0 %v896
    %1292 = vmatprep.subr.bf16.mxu0 0
    %1293 = vmatpush2.bf16.msra.mxu0 %v893
    %1294 = vmatprep.mubr.bf16.mxu0 %v284
    %1295 = vmatmul.mubr.bf16.gmra.mxu0 %v283
    %v1296 = vpop.f32.mrf.mxu0
    %v1297 = vadd.f32 %v1257, %v1296
    %v1298 = vpop.f32.mrf.mxu0
    %v1299 = vpop.f32.mrf.mxu0
    %v1300 = vpop.f32.mrf.mxu0
    %1301 = vdwg.mxu0
    %v1302 = vtanh.pop %v1176
    %v1303 = vtanh.pop %v1178
    %v1304 = vtanh.pop %v1297
    %v1305 = vpack.c.bf16 %v1302, %v1302
    %v1306 = vpack.c.bf16 %v1303, %v1303
    %v1307 = vpack.c.bf16 %v1304, %v1304
    %v1308 = vld [vmem:[#allocation5] sm:$0xff]
    %v1309 = vld [vmem:[#allocation5 + $0x8] sm:$0xff]
    %v1310 = vld [vmem:[#allocation5 + $0x10] sm:$0xff]
    %v1311 = vld [vmem:[#allocation5 + $0x18] sm:$0xff]
    %v1312 = vld [vmem:[#allocation5 + $0x20] sm:$0xff]
    %v1313 = vld [vmem:[#allocation5 + $0x28] sm:$0xff]
    %v1314 = vld [vmem:[#allocation5 + $0x30] sm:$0xff]
    %v1315 = vld [vmem:[#allocation5 + $0x38] sm:$0xff]
    %v1316 = vld [vmem:[#allocation5 + $0x40] sm:$0xff]
    %v1317 = vld [vmem:[#allocation5 + $0x48] sm:$0xff]
    %v1318 = vld [vmem:[#allocation5 + $0x50] sm:$0xff]
    %v1319 = vld [vmem:[#allocation5 + $0x58] sm:$0xff]
    %v1320 = vld [vmem:[#allocation5 + $0x60] sm:$0xff]
    %v1321 = vld [vmem:[#allocation5 + $0x68] sm:$0xff]
    %v1322 = vld [vmem:[#allocation5 + $0x70] sm:$0xff]
    %v1323 = vld [vmem:[#allocation5 + $0x78] sm:$0xff]
    %v1324 = vld [vmem:[#allocation5 + $0x80] sm:$0xff]
    %v1325 = vld [vmem:[#allocation5 + $0x88] sm:$0xff]
    %v1326 = vld [vmem:[#allocation5 + $0x90] sm:$0xff]
    %v1327 = vld [vmem:[#allocation5 + $0x98] sm:$0xff]
    %v1328 = vld [vmem:[#allocation5 + $0xa0] sm:$0xff]
    %v1329 = vld [vmem:[#allocation5 + $0xa8] sm:$0xff]
    %v1330 = vld [vmem:[#allocation5 + $0xb0] sm:$0xff]
    %v1331 = vld [vmem:[#allocation5 + $0xb8] sm:$0xff]
    %v1332 = vld [vmem:[#allocation5 + $0xc0] sm:$0xff]
    %v1333 = vld [vmem:[#allocation5 + $0xc8] sm:$0xff]
    %v1334 = vld [vmem:[#allocation5 + $0xd0] sm:$0xff]
    %v1335 = vld [vmem:[#allocation5 + $0xd8] sm:$0xff]
    %v1336 = vld [vmem:[#allocation5 + $0xe0] sm:$0xff]
    %v1337 = vld [vmem:[#allocation5 + $0xe8] sm:$0xff]
    %v1338 = vld [vmem:[#allocation5 + $0xf0] sm:$0xff]
    %v1339 = vld [vmem:[#allocation5 + $0xf8] sm:$0xff]
    %v1340 = vld [vmem:[#allocation5 + $0x100] sm:$0xff]
    %v1341 = vld [vmem:[#allocation5 + $0x108] sm:$0xff]
    %v1342 = vld [vmem:[#allocation5 + $0x110] sm:$0xff]
    %v1343 = vld [vmem:[#allocation5 + $0x118] sm:$0xff]
    %v1344 = vld [vmem:[#allocation5 + $0x120] sm:$0xff]
    %v1345 = vld [vmem:[#allocation5 + $0x128] sm:$0xff]
    %v1346 = vld [vmem:[#allocation5 + $0x130] sm:$0xff]
    %v1347 = vld [vmem:[#allocation5 + $0x138] sm:$0xff]
    %v1348 = vld [vmem:[#allocation5 + $0x140] sm:$0xff]
    %v1349 = vld [vmem:[#allocation5 + $0x148] sm:$0xff]
    %v1350 = vld [vmem:[#allocation5 + $0x150] sm:$0xff]
    %v1351 = vld [vmem:[#allocation5 + $0x158] sm:$0xff]
    %v1352 = vld [vmem:[#allocation5 + $0x160] sm:$0xff]
    %v1353 = vld [vmem:[#allocation5 + $0x168] sm:$0xff]
    %v1354 = vld [vmem:[#allocation5 + $0x170] sm:$0xff]
    %v1355 = vld [vmem:[#allocation5 + $0x178] sm:$0xff]
    %v1357 = vlaneseq
    %v1358 = vshrl.u32 %v1357, 7
    %v1359 = vsub.s32 0, %v1358
    %v1360 = vrot.slane %v57, %v1359
    %v1361 = vlaneseq
    %v1362 = vshrl.u32 %v1361, 7
    %v1363 = vsub.s32 1, %v1362
    %v1364 = vrot.slane %v57, %v1363
    %v1415 = vunpack.c.l.b16 %v1308
    %v1416 = vunpack.c.h.b16 %v1308
    %v1417 = vunpack.c.l.b16 %v1309
    %v1418 = vunpack.c.h.b16 %v1309
    %v1419 = vunpack.c.l.b16 %v1310
    %v1420 = vunpack.c.h.b16 %v1310
    %v1421 = vunpack.c.l.b16 %v1311
    %v1422 = vunpack.c.h.b16 %v1311
    %v1423 = vunpack.c.l.b16 %v1312
    %v1424 = vunpack.c.h.b16 %v1312
    %v1425 = vunpack.c.l.b16 %v1313
    %v1426 = vunpack.c.h.b16 %v1313
    %v1427 = vunpack.c.l.b16 %v1314
    %v1428 = vunpack.c.h.b16 %v1314
    %v1429 = vunpack.c.l.b16 %v1315
    %v1430 = vunpack.c.h.b16 %v1315
    %v1431 = vunpack.c.l.b16 %v1316
    %v1432 = vunpack.c.h.b16 %v1316
    %v1433 = vunpack.c.l.b16 %v1317
    %v1434 = vunpack.c.h.b16 %v1317
    %v1435 = vunpack.c.l.b16 %v1318
    %v1436 = vunpack.c.h.b16 %v1318
    %v1437 = vunpack.c.l.b16 %v1319
    %v1438 = vunpack.c.h.b16 %v1319
    %v1439 = vunpack.c.l.b16 %v1320
    %v1440 = vunpack.c.h.b16 %v1320
    %v1441 = vunpack.c.l.b16 %v1321
    %v1442 = vunpack.c.h.b16 %v1321
    %v1443 = vunpack.c.l.b16 %v1322
    %v1444 = vunpack.c.h.b16 %v1322
    %v1445 = vunpack.c.l.b16 %v1323
    %v1446 = vunpack.c.h.b16 %v1323
    %v1447 = vunpack.c.l.b16 %v1324
    %v1448 = vunpack.c.h.b16 %v1324
    %v1449 = vunpack.c.l.b16 %v1325
    %v1450 = vunpack.c.h.b16 %v1325
    %v1451 = vunpack.c.l.b16 %v1326
    %v1452 = vunpack.c.h.b16 %v1326
    %v1453 = vunpack.c.l.b16 %v1327
    %v1454 = vunpack.c.h.b16 %v1327
    %v1455 = vunpack.c.l.b16 %v1328
    %v1456 = vunpack.c.h.b16 %v1328
    %v1457 = vunpack.c.l.b16 %v1329
    %v1458 = vunpack.c.h.b16 %v1329
    %v1459 = vunpack.c.l.b16 %v1330
    %v1460 = vunpack.c.h.b16 %v1330
    %v1461 = vunpack.c.l.b16 %v1331
    %v1462 = vunpack.c.h.b16 %v1331
    %v1463 = vunpack.c.l.b16 %v1332
    %v1464 = vunpack.c.h.b16 %v1332
    %v1465 = vunpack.c.l.b16 %v1333
    %v1466 = vunpack.c.h.b16 %v1333
    %v1467 = vunpack.c.l.b16 %v1334
    %v1468 = vunpack.c.h.b16 %v1334
    %v1469 = vunpack.c.l.b16 %v1335
    %v1470 = vunpack.c.h.b16 %v1335
    %v1471 = vunpack.c.l.b16 %v1336
    %v1472 = vunpack.c.h.b16 %v1336
    %v1473 = vunpack.c.l.b16 %v1337
    %v1474 = vunpack.c.h.b16 %v1337
    %v1475 = vunpack.c.l.b16 %v1338
    %v1476 = vunpack.c.h.b16 %v1338
    %v1477 = vunpack.c.l.b16 %v1339
    %v1478 = vunpack.c.h.b16 %v1339
    %v1479 = vunpack.c.l.b16 %v1340
    %v1480 = vunpack.c.h.b16 %v1340
    %v1481 = vunpack.c.l.b16 %v1341
    %v1482 = vunpack.c.h.b16 %v1341
    %v1483 = vunpack.c.l.b16 %v1342
    %v1484 = vunpack.c.h.b16 %v1342
    %v1485 = vunpack.c.l.b16 %v1343
    %v1486 = vunpack.c.h.b16 %v1343
    %v1487 = vunpack.c.l.b16 %v1344
    %v1488 = vunpack.c.h.b16 %v1344
    %v1489 = vunpack.c.l.b16 %v1345
    %v1490 = vunpack.c.h.b16 %v1345
    %v1491 = vunpack.c.l.b16 %v1346
    %v1492 = vunpack.c.h.b16 %v1346
    %v1493 = vunpack.c.l.b16 %v1347
    %v1494 = vunpack.c.h.b16 %v1347
    %v1495 = vunpack.c.l.b16 %v1348
    %v1496 = vunpack.c.h.b16 %v1348
    %v1497 = vunpack.c.l.b16 %v1349
    %v1498 = vunpack.c.h.b16 %v1349
    %v1499 = vunpack.c.l.b16 %v1350
    %v1500 = vunpack.c.h.b16 %v1350
    %v1501 = vunpack.c.l.b16 %v1351
    %v1502 = vunpack.c.h.b16 %v1351
    %v1503 = vunpack.c.l.b16 %v1352
    %v1504 = vunpack.c.h.b16 %v1352
    %v1505 = vunpack.c.l.b16 %v1353
    %v1506 = vunpack.c.h.b16 %v1353
    %v1507 = vunpack.c.l.b16 %v1354
    %v1508 = vunpack.c.h.b16 %v1354
    %v1509 = vunpack.c.l.b16 %v1355
    %v1510 = vunpack.c.h.b16 %v1355
    %v1511 = vpack.c.b16 %v1417, %v1415
    %v1512 = vpack.c.b16 %v1418, %v1416
    %v1513 = vpack.c.b16 %v1421, %v1419
    %v1514 = vpack.c.b16 %v1422, %v1420
    %v1515 = vpack.c.b16 %v1425, %v1423
    %v1516 = vpack.c.b16 %v1426, %v1424
    %v1517 = vpack.c.b16 %v1429, %v1427
    %v1518 = vpack.c.b16 %v1430, %v1428
    %v1519 = vpack.c.b16 %v1433, %v1431
    %v1520 = vpack.c.b16 %v1434, %v1432
    %v1521 = vpack.c.b16 %v1437, %v1435
    %v1522 = vpack.c.b16 %v1438, %v1436
    %v1523 = vpack.c.b16 %v1441, %v1439
    %v1524 = vpack.c.b16 %v1442, %v1440
    %v1525 = vpack.c.b16 %v1445, %v1443
    %v1526 = vpack.c.b16 %v1446, %v1444
    %v1527 = vpack.c.b16 %v1449, %v1447
    %v1528 = vpack.c.b16 %v1450, %v1448
    %v1529 = vpack.c.b16 %v1453, %v1451
    %v1530 = vpack.c.b16 %v1454, %v1452
    %v1531 = vpack.c.b16 %v1457, %v1455
    %v1532 = vpack.c.b16 %v1458, %v1456
    %v1533 = vpack.c.b16 %v1461, %v1459
    %v1534 = vpack.c.b16 %v1462, %v1460
    %v1535 = vpack.c.b16 %v1465, %v1463
    %v1536 = vpack.c.b16 %v1466, %v1464
    %v1537 = vpack.c.b16 %v1469, %v1467
    %v1538 = vpack.c.b16 %v1470, %v1468
    %v1539 = vpack.c.b16 %v1473, %v1471
    %v1540 = vpack.c.b16 %v1474, %v1472
    %v1541 = vpack.c.b16 %v1477, %v1475
    %v1542 = vpack.c.b16 %v1478, %v1476
    %v1543 = vpack.c.b16 %v1481, %v1479
    %v1544 = vpack.c.b16 %v1482, %v1480
    %v1545 = vpack.c.b16 %v1485, %v1483
    %v1546 = vpack.c.b16 %v1486, %v1484
    %v1547 = vpack.c.b16 %v1489, %v1487
    %v1548 = vpack.c.b16 %v1490, %v1488
    %v1549 = vpack.c.b16 %v1493, %v1491
    %v1550 = vpack.c.b16 %v1494, %v1492
    %v1551 = vpack.c.b16 %v1497, %v1495
    %v1552 = vpack.c.b16 %v1498, %v1496
    %v1553 = vpack.c.b16 %v1501, %v1499
    %v1554 = vpack.c.b16 %v1502, %v1500
    %v1555 = vpack.c.b16 %v1505, %v1503
    %v1556 = vpack.c.b16 %v1506, %v1504
    %v1557 = vpack.c.b16 %v1509, %v1507
    %v1558 = vpack.c.b16 %v1510, %v1508
    %1607 = vmatprep.subr.bf16.mxu0 %v1526
    %1608 = vmatpush1.bf16.msra.mxu0 %v1525
    %1609 = vmatprep.subr.bf16.mxu0 %v1524
    %1610 = vmatpush1.bf16.msra.mxu0 %v1523
    %1611 = vmatprep.subr.bf16.mxu0 %v1522
    %1612 = vmatpush1.bf16.msra.mxu0 %v1521
    %1613 = vmatprep.subr.bf16.mxu0 %v1520
    %1614 = vmatpush1.bf16.msra.mxu0 %v1519
    %1615 = vmatprep.subr.bf16.mxu0 %v1518
    %1616 = vmatpush1.bf16.msra.mxu0 %v1517
    %1617 = vmatprep.subr.bf16.mxu0 %v1516
    %1618 = vmatpush1.bf16.msra.mxu0 %v1515
    %1619 = vmatprep.subr.bf16.mxu0 %v1514
    %1620 = vmatpush1.bf16.msra.mxu0 %v1513
    %1621 = vmatprep.subr.bf16.mxu0 %v1512
    %1622 = vmatpush1.bf16.msra.mxu0 %v1511
    %1623 = vmatprep.subr.bf16.mxu0 %v1542
    %1624 = vmatpush2.bf16.msra.mxu0 %v1541
    %1625 = vmatprep.subr.bf16.mxu0 %v1540
    %1626 = vmatpush2.bf16.msra.mxu0 %v1539
    %1627 = vmatprep.subr.bf16.mxu0 %v1538
    %1628 = vmatpush2.bf16.msra.mxu0 %v1537
    %1629 = vmatprep.subr.bf16.mxu0 %v1536
    %1630 = vmatpush2.bf16.msra.mxu0 %v1535
    %1631 = vmatprep.subr.bf16.mxu0 %v1534
    %1632 = vmatpush2.bf16.msra.mxu0 %v1533
    %1633 = vmatprep.subr.bf16.mxu0 %v1532
    %1634 = vmatpush2.bf16.msra.mxu0 %v1531
    %1635 = vmatprep.subr.bf16.mxu0 %v1530
    %1636 = vmatpush2.bf16.msra.mxu0 %v1529
    %1637 = vmatprep.subr.bf16.mxu0 %v1528
    %1638 = vmatpush2.bf16.msra.mxu0 %v1527
    %1639 = vmatprep.mubr.bf16.mxu0 %v1306
    %1640 = vmatmul.mubr.bf16.gmra.mxu0 %v1305
    %v1641 = vpop.f32.mrf.mxu0
    %v1642 = vadd.f32 %v1360, %v1641
    %v1643 = vpop.f32.mrf.mxu0
    %v1644 = vadd.f32 %v1364, %v1643
    %v1645 = vpop.f32.mrf.mxu0
    %v1646 = vpop.f32.mrf.mxu0
    %1647 = vdwg.mxu0
    %1648 = vmatprep.subr.bf16.mxu0 %v1558
    %1649 = vmatpush1.bf16.msra.mxu0 %v1557
    %1650 = vmatprep.subr.bf16.mxu0 %v1556
    %1651 = vmatpush1.bf16.msra.mxu0 %v1555
    %1652 = vmatprep.subr.bf16.mxu0 %v1554
    %1653 = vmatpush1.bf16.msra.mxu0 %v1553
    %1654 = vmatprep.subr.bf16.mxu0 %v1552
    %1655 = vmatpush1.bf16.msra.mxu0 %v1551
    %1656 = vmatprep.subr.bf16.mxu0 %v1550
    %1657 = vmatpush1.bf16.msra.mxu0 %v1549
    %1658 = vmatprep.subr.bf16.mxu0 %v1548
    %1659 = vmatpush1.bf16.msra.mxu0 %v1547
    %1660 = vmatprep.subr.bf16.mxu0 %v1546
    %1661 = vmatpush1.bf16.msra.mxu0 %v1545
    %1662 = vmatprep.subr.bf16.mxu0 %v1544
    %1663 = vmatpush1.bf16.msra.mxu0 %v1543
    %1664 = vmatprep.subr.bf16.mxu0 0
    %1665 = vmatpush2.bf16.msra.mxu0 0
    %1666 = vmatprep.subr.bf16.mxu0 0
    %1667 = vmatpush2.bf16.msra.mxu0 0
    %1668 = vmatprep.subr.bf16.mxu0 0
    %1669 = vmatpush2.bf16.msra.mxu0 0
    %1670 = vmatprep.subr.bf16.mxu0 0
    %1671 = vmatpush2.bf16.msra.mxu0 0
    %1672 = vmatprep.subr.bf16.mxu0 0
    %1673 = vmatpush2.bf16.msra.mxu0 0
    %1674 = vmatprep.subr.bf16.mxu0 0
    %1675 = vmatpush2.bf16.msra.mxu0 0
    %1676 = vmatprep.subr.bf16.mxu0 0
    %1677 = vmatpush2.bf16.msra.mxu0 0
    %1678 = vmatprep.subr.bf16.mxu0 0
    %1679 = vmatpush2.bf16.msra.mxu0 0
    %1680 = vmatprep.mubr.bf16.mxu0 0
    %1681 = vmatmul.mubr.bf16.gmra.mxu0 %v1307
    %v1682 = vpop.f32.mrf.mxu0
    %v1683 = vadd.f32 %v1642, %v1682
    %v1684 = vpop.f32.mrf.mxu0
    %v1685 = vadd.f32 %v1644, %v1684
    %v1686 = vpop.f32.mrf.mxu0
    %v1687 = vpop.f32.mrf.mxu0
    %1688 = vdwg.mxu0
    %v1689 = vtanh.pop %v1683
    %v1690 = vtanh.pop %v1685
    %v1691 = vpack.c.bf16 %v1689, %v1689
    %v1692 = vpack.c.bf16 %v1690, %v1690
    %v1693 = vld [vmem:[%s5] sm:$0xf]
    %v1694 = vld [vmem:[%s5 + $0x4] sm:$0xf]
    %v1695 = vld [vmem:[%s5 + $0x8] sm:$0xf]
    %v1696 = vld [vmem:[%s5 + $0xc] sm:$0xf]
    %v1697 = vld [vmem:[%s5 + $0x10] sm:$0xf]
    %v1698 = vld [vmem:[%s5 + $0x14] sm:$0xf]
    %v1699 = vld [vmem:[%s5 + $0x18] sm:$0xf]
    %v1700 = vld [vmem:[%s5 + $0x1c] sm:$0xf]
    %v1701 = vld [vmem:[%s5 + $0x20] sm:$0xf]
    %v1702 = vld [vmem:[%s5 + $0x24] sm:$0xf]
    %v1703 = vld [vmem:[%s5 + $0x28] sm:$0xf]
    %v1704 = vld [vmem:[%s5 + $0x2c] sm:$0xf]
    %v1705 = vld [vmem:[%s5 + $0x30] sm:$0xf]
    %v1706 = vld [vmem:[%s5 + $0x34] sm:$0xf]
    %v1707 = vld [vmem:[%s5 + $0x38] sm:$0xf]
    %v1708 = vld [vmem:[%s5 + $0x3c] sm:$0xf]
    %v1709 = vld [vmem:[%s5 + $0x40] sm:$0xf]
    %v1710 = vld [vmem:[%s5 + $0x44] sm:$0xf]
    %v1711 = vld [vmem:[%s5 + $0x48] sm:$0xf]
    %v1712 = vld [vmem:[%s5 + $0x4c] sm:$0xf]
    %v1713 = vld [vmem:[%s5 + $0x50] sm:$0xf]
    %v1714 = vld [vmem:[%s5 + $0x54] sm:$0xf]
    %v1715 = vld [vmem:[%s5 + $0x58] sm:$0xf]
    %v1716 = vld [vmem:[%s5 + $0x5c] sm:$0xf]
    %v1717 = vld [vmem:[%s5 + $0x60] sm:$0xf]
    %v1718 = vld [vmem:[%s5 + $0x64] sm:$0xf]
    %v1719 = vld [vmem:[%s5 + $0x68] sm:$0xf]
    %v1720 = vld [vmem:[%s5 + $0x6c] sm:$0xf]
    %v1721 = vld [vmem:[%s5 + $0x70] sm:$0xf]
    %v1722 = vld [vmem:[%s5 + $0x74] sm:$0xf]
    %v1723 = vld [vmem:[%s5 + $0x78] sm:$0xf]
    %v1724 = vld [vmem:[%s5 + $0x7c] sm:$0xf]
    %v1726 = vlaneseq
    %v1727 = vshrl.u32 %v1726, 7
    %v1728 = vsub.s32 0, %v1727
    %v1729 = vrot.slane %v58, %v1728
    %v1763 = vunpack.c.l.b16 %v1693
    %v1764 = vunpack.c.l.b16 %v1694
    %v1765 = vunpack.c.l.b16 %v1695
    %v1766 = vunpack.c.l.b16 %v1696
    %v1767 = vunpack.c.l.b16 %v1697
    %v1768 = vunpack.c.l.b16 %v1698
    %v1769 = vunpack.c.l.b16 %v1699
    %v1770 = vunpack.c.l.b16 %v1700
    %v1771 = vunpack.c.l.b16 %v1701
    %v1772 = vunpack.c.l.b16 %v1702
    %v1773 = vunpack.c.l.b16 %v1703
    %v1774 = vunpack.c.l.b16 %v1704
    %v1775 = vunpack.c.l.b16 %v1705
    %v1776 = vunpack.c.l.b16 %v1706
    %v1777 = vunpack.c.l.b16 %v1707
    %v1778 = vunpack.c.l.b16 %v1708
    %v1779 = vunpack.c.l.b16 %v1709
    %v1780 = vunpack.c.l.b16 %v1710
    %v1781 = vunpack.c.l.b16 %v1711
    %v1782 = vunpack.c.l.b16 %v1712
    %v1783 = vunpack.c.l.b16 %v1713
    %v1784 = vunpack.c.l.b16 %v1714
    %v1785 = vunpack.c.l.b16 %v1715
    %v1786 = vunpack.c.l.b16 %v1716
    %v1787 = vunpack.c.l.b16 %v1717
    %v1788 = vunpack.c.l.b16 %v1718
    %v1789 = vunpack.c.l.b16 %v1719
    %v1790 = vunpack.c.l.b16 %v1720
    %v1791 = vunpack.c.l.b16 %v1721
    %v1792 = vunpack.c.l.b16 %v1722
    %v1793 = vunpack.c.l.b16 %v1723
    %v1794 = vunpack.c.l.b16 %v1724
    %v1795 = vpack.c.b16 %v1764, %v1763
    %v1796 = vpack.c.b16 %v1766, %v1765
    %v1797 = vpack.c.b16 %v1768, %v1767
    %v1798 = vpack.c.b16 %v1770, %v1769
    %v1799 = vpack.c.b16 %v1772, %v1771
    %v1800 = vpack.c.b16 %v1774, %v1773
    %v1801 = vpack.c.b16 %v1776, %v1775
    %v1802 = vpack.c.b16 %v1778, %v1777
    %v1803 = vpack.c.b16 %v1780, %v1779
    %v1804 = vpack.c.b16 %v1782, %v1781
    %v1805 = vpack.c.b16 %v1784, %v1783
    %v1806 = vpack.c.b16 %v1786, %v1785
    %v1807 = vpack.c.b16 %v1788, %v1787
    %v1808 = vpack.c.b16 %v1790, %v1789
    %v1809 = vpack.c.b16 %v1792, %v1791
    %v1810 = vpack.c.b16 %v1794, %v1793
    %1827 = vmatprep.subr.bf16.mxu0 0
    %1828 = vmatpush1.bf16.msra.mxu0 %v1802
    %1829 = vmatprep.subr.bf16.mxu0 0
    %1830 = vmatpush1.bf16.msra.mxu0 %v1801
    %1831 = vmatprep.subr.bf16.mxu0 0
    %1832 = vmatpush1.bf16.msra.mxu0 %v1800
    %1833 = vmatprep.subr.bf16.mxu0 0
    %1834 = vmatpush1.bf16.msra.mxu0 %v1799
    %1835 = vmatprep.subr.bf16.mxu0 0
    %1836 = vmatpush1.bf16.msra.mxu0 %v1798
    %1837 = vmatprep.subr.bf16.mxu0 0
    %1838 = vmatpush1.bf16.msra.mxu0 %v1797
    %1839 = vmatprep.subr.bf16.mxu0 0
    %1840 = vmatpush1.bf16.msra.mxu0 %v1796
    %1841 = vmatprep.subr.bf16.mxu0 0
    %1842 = vmatpush1.bf16.msra.mxu0 %v1795
    %1843 = vmatprep.subr.bf16.mxu0 0
    %1844 = vmatpush2.bf16.msra.mxu0 %v1810
    %1845 = vmatprep.subr.bf16.mxu0 0
    %1846 = vmatpush2.bf16.msra.mxu0 %v1809
    %1847 = vmatprep.subr.bf16.mxu0 0
    %1848 = vmatpush2.bf16.msra.mxu0 %v1808
    %1849 = vmatprep.subr.bf16.mxu0 0
    %1850 = vmatpush2.bf16.msra.mxu0 %v1807
    %1851 = vmatprep.subr.bf16.mxu0 0
    %1852 = vmatpush2.bf16.msra.mxu0 %v1806
    %1853 = vmatprep.subr.bf16.mxu0 0
    %1854 = vmatpush2.bf16.msra.mxu0 %v1805
    %1855 = vmatprep.subr.bf16.mxu0 0
    %1856 = vmatpush2.bf16.msra.mxu0 %v1804
    %1857 = vmatprep.subr.bf16.mxu0 0
    %1858 = vmatpush2.bf16.msra.mxu0 %v1803
    %1859 = vmatprep.mubr.bf16.mxu0 %v1692
    %1860 = vmatmul.mubr.bf16.gmra.mxu0 %v1691
    %v1861 = vpop.f32.mrf.mxu0
    %v1862 = vadd.f32 %v1729, %v1861
    %v1863 = vpop.f32.mrf.mxu0
    %v1864 = vpop.f32.mrf.mxu0
    %v1865 = vpop.f32.mrf.mxu0
    %1866 = vdwg.mxu0
    %vm1867 = vcmask 80896
    %1868 = vst.msk [vmem:[#allocation7] sm:$0xff] %vm1867, %v1862
    // Predicated region
    $region38: #{tpu_custom_call.1} parent=1 // pred_check
      _
    $region39: #{tpu_custom_call.1} parent=1 // pred_check_branch
      %1870 = sbr.rel (0) target = $region41
    $region40: #{tpu_custom_call.1} parent=1 // pred_region
      %s1872 = ssub.s32 128, 128
      %1873 = vsyncadd [#allocation4], %s1872
      %s1875 = sshll.u32 [#allocation7], 4
      %s1876 = int_to_ptr.vmem [resolvable:$true] %s1875
      %1878 = dma.vmem_to_hbm [thread:$0]  %s1876, 128, %s7, [#allocation4]
    $region41: #{tpu_custom_call.1} parent=1 // pred_fallthru
      _
    // Predicated region
    $region42: #{tpu_custom_call.1} parent=1 // pred_check
      _
    $region43: #{tpu_custom_call.1} parent=1 // pred_check_branch
      %1880 = sbr.rel (0) target = $region45
    $region44: #{tpu_custom_call.1} parent=1 // pred_region
      %1881 = dma.done [#allocation4], 128
    $region45: #{tpu_custom_call.1} parent=1 // pred_fallthru
      _
    %1882 = vsyncpa [#allocation3], 1
    %1883 = vsyncpa [#allocation6], 1
    %1884 = vsyncpa [#allocation4], 1

</llo_original>
